<compile_context>
chip_gen: v7x
topology: tpu7x:2x2x1
jax: 0.10.0
libtpu: 0.0.40
codegen_flags: <defaults>
</compile_context>

<pallas_src>
import functools

import jax
import jax.numpy as jnp
from jax import lax
from jax.experimental import pallas as pl
from jax.experimental.pallas import tpu as pltpu


def _attention_kernel(x_ref, wqkv_ref, bqkv_ref, wout_ref, bout_ref, o_ref, *,
                      heads, dim_head, approx_recip):
    """One grid step: a (bt, C, N) NCW block -> (bt, C, N) output block."""
    bt, _, n = x_ref.shape
    hidden = heads * dim_head
    cdt = wqkv_ref.dtype            # MXU input dtype (f32, or bf16 on any chip)

    w_qkv = wqkv_ref[...]           # (3H, C) -- BN affine + q-scale folded in
    b_qkv = bqkv_ref[...]           # (3H, 1)
    w_out = wout_ref[...]           # (C, H)
    b_out = bout_ref[...]           # (C, 1)

    # Static unroll over the (small) batch block: one wide 2-D matmul per
    # projection per element, single weight copy in vregs, no broadcast_to.
    for b in range(bt):
        x = x_ref[b].astype(cdt)                                      # (C, N)

        # to_qkv (1x1 conv == channel matmul); BN affine + softmax q-scale are
        # already folded into w_qkv / b_qkv -> no per-activation VPU work.
        qkv = jnp.dot(w_qkv, x, preferred_element_type=jnp.float32)   # (3H, N)
        qkv = qkv + b_qkv

        q = qkv[0 * hidden:1 * hidden].reshape(heads, dim_head, n).astype(cdt)
        k = qkv[1 * hidden:2 * hidden].reshape(heads, dim_head, n).astype(cdt)
        v = qkv[2 * hidden:3 * hidden].reshape(heads, dim_head, n).astype(cdt)

        # scores[h, i, j] = sum_d q[h, d, i] * k[h, d, j]  (batched over heads)
        s = lax.dot_general(q, k, (((1,), (1,)), ((0,), (0,))),
                            preferred_element_type=jnp.float32)       # (H,N,N)
        s = s - jnp.max(s, axis=-1, keepdims=True)
        p = jnp.exp(s)
        denom = jnp.sum(p, axis=-1, keepdims=True)
        if approx_recip:
            p = p * pl.reciprocal(denom, approx=True)   # EUP slot, ~free
        else:
            p = p / denom

        # out[h, d, i] = sum_j v[h, d, j] * p[h, i, j]
        out = lax.dot_general(v, p.astype(cdt), (((2,), (2,)), ((0,), (0,))),
                              preferred_element_type=jnp.float32)     # (H,dh,N)
        out = out.reshape(hidden, n).astype(cdt)          # 'h d n -> (h d) n'

        # to_out (1x1 conv) + bias; channels on sublanes / N on lanes.
        y = jnp.dot(w_out, out, preferred_element_type=jnp.float32)   # (C, N)
        o_ref[b] = (y + b_out).astype(o_ref.dtype)


def attention_forward(x, params, *, heads, block_b=None,
                      compute_dtype=jnp.float32,
                      running_mean=None, running_var=None,
                      approx_recip=True,
                      vmem_limit_bytes=48 * 1024 * 1024):
    """x: (B, C, N) float32 (PyTorch Conv1d NCW layout).  Returns (B, C, N).

    block_b: batch elements per grid step.  Default keeps the grid multi-step
      (bt=1 for small B, ~8 steps for large B) so pipelining hides DMA and the
      "parallel" batch axis shards across v7x's two TensorCores.
    compute_dtype: MXU input dtype; bf16 is safe on v5e/v6e/v7x (accumulation
      and all VPU/EUP work stay f32).
    running_mean / running_var: if both given (eval mode), the BN statistics
      pass over x is skipped entirely.
    """
    B, C, N = x.shape
    assert C % heads == 0
    dim = C
    dim_head = dim // heads
    hidden = dim_head * heads
    scale = dim_head ** (-0.5)
    eps = 1e-5

    # ---- BatchNorm1d statistics ---------------------------------------------
    if running_mean is not None and running_var is not None:
        mean, var = running_mean, running_var           # eval mode: no x pass
    else:
        # Train mode: single fused pass over x (XLA fuses both reductions).
        # Shifted moments (K = a real data point per channel) avoid the
        # catastrophic cancellation of E[x^2] - E[x]^2 when |mean| >> std.
        shift = lax.stop_gradient(x[:1, :, :1])         # (1, C, 1)
        xc = x - shift
        mean_c = jnp.mean(xc, axis=(0, 2))              # (C,)
        var = jnp.maximum(jnp.mean(xc * xc, axis=(0, 2)) - mean_c * mean_c, 0.0)
        mean = mean_c + shift[0, :, 0]
    bn_scale = params["bn_gamma"] * lax.rsqrt(var + eps)            # (C,)
    bn_shift = params["bn_beta"] - mean * bn_scale                  # (C,)

    # ---- Fold BN affine + softmax q-scale into the qkv projection (trace
    # time, tiny weight tensors; no per-activation HBM / VPU cost) ------------
    qscale = jnp.concatenate([jnp.full((hidden,), scale, jnp.float32),
                              jnp.ones((2 * hidden,), jnp.float32)])
    w_qkv = (params["w_qkv"] * bn_scale[None, :]) * qscale[:, None]    # (3H, C)
    b_qkv = ((params["w_qkv"] @ bn_shift) * qscale).reshape(3 * hidden, 1)
    w_out = params["w_out"]                                         # (C, H)
    b_out = params["b_out"].reshape(dim, 1)                         # (C, 1)

    w_qkv = w_qkv.astype(compute_dtype)
    w_out = w_out.astype(compute_dtype)

    # ---- Batch blocking: keep a multi-step grid (pipelining + dual-TC) ------
    if block_b is None:
        bt = max(1, B // 8)
        while B % bt:
            bt -= 1
    else:
        bt = min(block_b, B)
    assert B % bt == 0, "block_b must divide the batch"

    kernel = functools.partial(_attention_kernel, heads=heads,
                               dim_head=dim_head, approx_recip=approx_recip)

    return pl.pallas_call(
        kernel,
        out_shape=jax.ShapeDtypeStruct((B, dim, N), x.dtype),
        grid_spec=pltpu.PrefetchScalarGridSpec(
            num_scalar_prefetch=0,
            grid=(B // bt,),
            in_specs=[
                pl.BlockSpec((bt, C, N), lambda i: (i, 0, 0)),      # x (NCW)
                pl.BlockSpec((3 * hidden, C), lambda i: (0, 0)),    # folded W_qkv
                pl.BlockSpec((3 * hidden, 1), lambda i: (0, 0)),    # folded b_qkv
                pl.BlockSpec((dim, hidden), lambda i: (0, 0)),      # W_out
                pl.BlockSpec((dim, 1), lambda i: (0, 0)),           # b_out
            ],
            out_specs=pl.BlockSpec((bt, dim, N), lambda i: (i, 0, 0)),
        ),
        compiler_params=pltpu.CompilerParams(
            dimension_semantics=("parallel",),
            vmem_limit_bytes=vmem_limit_bytes,
        ),
    )(x, w_qkv, b_qkv, w_out, b_out)


def attention_reference(x, params, *, heads):
    """Pure-JAX reference replicating the PyTorch forward (exact softmax, f32)."""
    B, C, N = x.shape
    dim_head = C // heads
    scale = dim_head ** (-0.5)
    eps = 1e-5

    mean = jnp.mean(x, axis=(0, 2), keepdims=True)
    var = jnp.mean((x - mean) ** 2, axis=(0, 2), keepdims=True)
    xn = (x - mean) / jnp.sqrt(var + eps)
    xn = xn * params["bn_gamma"][None, :, None] + params["bn_beta"][None, :, None]

    qkv = jnp.einsum("oc,bcn->bon", params["w_qkv"], xn)        # (B, 3*hidden, N)
    q, k, v = jnp.split(qkv, 3, axis=1)

    def to_heads(t):  # 'b (h c) n -> b h c n'
        return t.reshape(B, heads, dim_head, N)

    q, k, v = map(to_heads, (q, k, v))
    q = q * scale
    raw = jnp.einsum("bhdi,bhdj->bhij", q, k)
    attn = jax.nn.softmax(raw, axis=-1)
    out = jnp.einsum("bhij,bhdj->bhid", attn, v)                # (B, H, N, d)
    out = jnp.transpose(out, (0, 1, 3, 2)).reshape(B, heads * dim_head, N)
    y = jnp.einsum("oc,bcn->bon", params["w_out"], out) + params["b_out"][None, :, None]
    return y


def make_params(key, dim, heads):
    dim_head = dim // heads
    hidden = dim_head * heads
    k1, k2, k3, k4, k5 = jax.random.split(key, 5)
    return {
        # Conv1d(dim, 3*hidden, 1, bias=False) weight: (3*hidden, dim)
        "w_qkv": 0.1 * jax.random.normal(k1, (3 * hidden, dim), jnp.float32),
        # Conv1d(hidden, dim, 1) weight/bias: (dim, hidden), (dim,)
        "w_out": 0.1 * jax.random.normal(k2, (dim, hidden), jnp.float32),
        "b_out": 0.1 * jax.random.normal(k3, (dim,), jnp.float32),
        # BatchNorm affine parameters.
        "bn_gamma": 1.0 + 0.1 * jax.random.normal(k4, (dim,), jnp.float32),
        "bn_beta": 0.1 * jax.random.normal(k5, (dim,), jnp.float32),
    }


if __name__ == "__main__":
    # Small shapes; B=8 so the default block_b yields an 8-step pipelined grid.
    B, dim, N, heads = 8, 32, 16, 4

    key = jax.random.PRNGKey(0)
    kx, kp = jax.random.split(key)
    x = jax.random.normal(kx, (B, dim, N), jnp.float32)
    params = make_params(kp, dim, heads)

    ref = attention_reference(x, params, heads=heads)

    # f32 MXU-input path (tight correctness check; only drift is approx recip).
    fwd = jax.jit(functools.partial(attention_forward, heads=heads))
    out = jax.block_until_ready(fwd(x, params))
    assert out.shape == (B, dim, N)
    assert jnp.allclose(out, ref, atol=5e-3, rtol=5e-3), "f32 kernel mismatch"

    # bf16 MXU-input path (safe on v5e/v6e/v7x); looser smoke-check tolerance.
    fwd_bf16 = jax.jit(functools.partial(attention_forward, heads=heads,
                                         compute_dtype=jnp.bfloat16))
    out_bf16 = jax.block_until_ready(fwd_bf16(x, params))
    assert jnp.allclose(out_bf16, ref, atol=5e-2, rtol=5e-2), "bf16 kernel mismatch"

    print("KERNEL_OK")
</pallas_src>

<mosaic_0001>
module attributes {stable_mosaic.version = 11 : i64} {
  func.func @_attention_kernel(%arg0: i32, %arg1: memref<1x32x16xf32, #tpu.memory_space<vmem>>, %arg2: memref<96x32xf32, #tpu.memory_space<vmem>>, %arg3: memref<96x1xf32, #tpu.memory_space<vmem>>, %arg4: memref<32x32xf32, #tpu.memory_space<vmem>>, %arg5: memref<32x1xf32, #tpu.memory_space<vmem>>, %arg6: memref<1x32x16xf32, #tpu.memory_space<vmem>>) attributes {dimension_semantics = [#tpu.dimension_semantics<parallel>], iteration_bounds = array<i64: 8>, scalar_prefetch = 0 : i64, scratch_operands = 0 : i64, tpu.core_type = #tpu.core_type<tc>, window_params = [{transform_indices = @transform_0, window_bounds = array<i64: 1, 32, 16>}, {pipeline_mode = #tpu.pipeline_mode<synchronous>, transform_indices = @transform_1, window_bounds = array<i64: 96, 32>}, {pipeline_mode = #tpu.pipeline_mode<synchronous>, transform_indices = @transform_2, window_bounds = array<i64: 96, 1>}, {pipeline_mode = #tpu.pipeline_mode<synchronous>, transform_indices = @transform_3, window_bounds = array<i64: 32, 32>}, {pipeline_mode = #tpu.pipeline_mode<synchronous>, transform_indices = @transform_4, window_bounds = array<i64: 32, 1>}, {transform_indices = @transform_5, window_bounds = array<i64: 1, 32, 16>}]} {
    %c0 = arith.constant 0 : index
    %c0_0 = arith.constant 0 : index
    %0 = vector.load %arg2[%c0, %c0_0] : memref<96x32xf32, #tpu.memory_space<vmem>>, vector<96x32xf32>
    %c0_1 = arith.constant 0 : index
    %c0_2 = arith.constant 0 : index
    %1 = vector.load %arg3[%c0_1, %c0_2] : memref<96x1xf32, #tpu.memory_space<vmem>>, vector<96x1xf32>
    %c0_3 = arith.constant 0 : index
    %c0_4 = arith.constant 0 : index
    %2 = vector.load %arg4[%c0_3, %c0_4] : memref<32x32xf32, #tpu.memory_space<vmem>>, vector<32x32xf32>
    %c0_5 = arith.constant 0 : index
    %c0_6 = arith.constant 0 : index
    %3 = vector.load %arg5[%c0_5, %c0_6] : memref<32x1xf32, #tpu.memory_space<vmem>>, vector<32x1xf32>
    %c0_7 = arith.constant 0 : index
    %c0_8 = arith.constant 0 : index
    %c0_9 = arith.constant 0 : index
    %4 = vector.load %arg1[%c0_7, %c0_8, %c0_9] : memref<1x32x16xf32, #tpu.memory_space<vmem>>, vector<1x32x16xf32>
    %5 = vector.shape_cast %4 : vector<1x32x16xf32> to vector<32x16xf32>
    %cst = arith.constant dense<0.000000e+00> : vector<96x16xf32>
    %6 = tpu.matmul %0, %5, %cst {dimension_numbers = #tpu.dot_dimension_numbers<[1], [0], [0], [1], [0, 0, 1, 1], [], []>} : vector<96x32xf32>, vector<32x16xf32>, vector<96x16xf32> -> vector<96x16xf32>
    %7 = vector.broadcast %1 : vector<96x1xf32> to vector<96x16xf32>
    %8 = arith.addf %6, %7 : vector<96x16xf32>
    %9 = vector.extract_strided_slice %8 {offsets = [0, 0], sizes = [32, 16], strides = [1, 1]} : vector<96x16xf32> to vector<32x16xf32>
    %10 = vector.shape_cast %9 : vector<32x16xf32> to vector<4x8x16xf32>
    %11 = vector.extract_strided_slice %8 {offsets = [32, 0], sizes = [32, 16], strides = [1, 1]} : vector<96x16xf32> to vector<32x16xf32>
    %12 = vector.shape_cast %11 : vector<32x16xf32> to vector<4x8x16xf32>
    %13 = vector.extract_strided_slice %8 {offsets = [64, 0], sizes = [32, 16], strides = [1, 1]} : vector<96x16xf32> to vector<32x16xf32>
    %14 = vector.shape_cast %13 : vector<32x16xf32> to vector<4x8x16xf32>
    %cst_10 = arith.constant dense<0.000000e+00> : vector<4x16x16xf32>
    %15 = tpu.matmul %10, %12, %cst_10 {dimension_numbers = #tpu.dot_dimension_numbers<[1], [1], [2], [2], [0, 0, 0, 2, 1, 2], [0], [0]>} : vector<4x8x16xf32>, vector<4x8x16xf32>, vector<4x16x16xf32> -> vector<4x16x16xf32>
    %cst_11 = arith.constant dense<0xFF800000> : vector<4x16xf32>
    %16 = vector.multi_reduction <maximumf>, %15, %cst_11 [2] : vector<4x16x16xf32> to vector<4x16xf32>
    %17 = vector.shape_cast %16 : vector<4x16xf32> to vector<4x16x1xf32>
    %18 = vector.broadcast %17 : vector<4x16x1xf32> to vector<4x16x16xf32>
    %19 = arith.subf %15, %18 : vector<4x16x16xf32>
    %20 = math.exp %19 : vector<4x16x16xf32>
    %cst_12 = arith.constant dense<0.000000e+00> : vector<4x16xf32>
    %21 = vector.multi_reduction <add>, %20, %cst_12 [2] : vector<4x16x16xf32> to vector<4x16xf32>
    %22 = vector.shape_cast %21 : vector<4x16xf32> to vector<4x16x1xf32>
    %23 = tpu.reciprocal %22 {approx = true} : vector<4x16x1xf32> -> vector<4x16x1xf32>
    %24 = vector.broadcast %23 : vector<4x16x1xf32> to vector<4x16x16xf32>
    %25 = arith.mulf %20, %24 : vector<4x16x16xf32>
    %cst_13 = arith.constant dense<0.000000e+00> : vector<4x8x16xf32>
    %26 = tpu.matmul %14, %25, %cst_13 {dimension_numbers = #tpu.dot_dimension_numbers<[2], [2], [1], [1], [0, 0, 0, 1, 1, 1], [0], [0]>} : vector<4x8x16xf32>, vector<4x16x16xf32>, vector<4x8x16xf32> -> vector<4x8x16xf32>
    %27 = vector.shape_cast %26 : vector<4x8x16xf32> to vector<32x16xf32>
    %cst_14 = arith.constant dense<0.000000e+00> : vector<32x16xf32>
    %28 = tpu.matmul %2, %27, %cst_14 {dimension_numbers = #tpu.dot_dimension_numbers<[1], [0], [0], [1], [0, 0, 1, 1], [], []>} : vector<32x32xf32>, vector<32x16xf32>, vector<32x16xf32> -> vector<32x16xf32>
    %29 = vector.broadcast %3 : vector<32x1xf32> to vector<32x16xf32>
    %30 = arith.addf %28, %29 : vector<32x16xf32>
    %c0_15 = arith.constant 0 : index
    %c0_16 = arith.constant 0 : index
    %c0_17 = arith.constant 0 : index
    %31 = vector.load %arg6[%c0_15, %c0_16, %c0_17] : memref<1x32x16xf32, #tpu.memory_space<vmem>>, vector<1x32x16xf32>
    %32 = vector.shape_cast %31 : vector<1x32x16xf32> to vector<32x16xf32>
    %33 = vector.shape_cast %30 : vector<32x16xf32> to vector<1x32x16xf32>
    tpu.vector_store %arg6[%c0_15, %c0_16, %c0_17], %33 {strides = array<i32>} : memref<1x32x16xf32, #tpu.memory_space<vmem>>, vector<1x32x16xf32>,
    return
  }
  func.func @transform_0(%arg0: i32) -> (i32, i32, i32) {
    %c0_i32 = arith.constant 0 : i32
    %c0_i32_0 = arith.constant 0 : i32
    %c0_i32_1 = arith.constant 0 : i32
    return %arg0, %c0_i32, %c0_i32_0 : i32, i32, i32
  }
  func.func @transform_1(%arg0: i32) -> (i32, i32) {
    %c0_i32 = arith.constant 0 : i32
    %c0_i32_0 = arith.constant 0 : i32
    %c0_i32_1 = arith.constant 0 : i32
    return %c0_i32, %c0_i32_0 : i32, i32
  }
  func.func @transform_2(%arg0: i32) -> (i32, i32) {
    %c0_i32 = arith.constant 0 : i32
    %c0_i32_0 = arith.constant 0 : i32
    %c0_i32_1 = arith.constant 0 : i32
    return %c0_i32, %c0_i32_0 : i32, i32
  }
  func.func @transform_3(%arg0: i32) -> (i32, i32) {
    %c0_i32 = arith.constant 0 : i32
    %c0_i32_0 = arith.constant 0 : i32
    %c0_i32_1 = arith.constant 0 : i32
    return %c0_i32, %c0_i32_0 : i32, i32
  }
  func.func @transform_4(%arg0: i32) -> (i32, i32) {
    %c0_i32 = arith.constant 0 : i32
    %c0_i32_0 = arith.constant 0 : i32
    %c0_i32_1 = arith.constant 0 : i32
    return %c0_i32, %c0_i32_0 : i32, i32
  }
  func.func @transform_5(%arg0: i32) -> (i32, i32, i32) {
    %c0_i32 = arith.constant 0 : i32
    %c0_i32_0 = arith.constant 0 : i32
    %c0_i32_1 = arith.constant 0 : i32
    return %arg0, %c0_i32, %c0_i32_0 : i32, i32, i32
  }
}

</mosaic_0001>

<llo_original>
// kernel: attention_forward.1
$region0: #{attention_forward.1}
  #allocation0 [shape = 'u32[]', space=smem, size = 0x4, offset = 0x4, fixed_abs, tag = 'smem constant byte address 0x4 - core index']
  #allocation1 [shape = 'u32[144,128]{1,0:T(1,128)}', space=vmem, size = 0x12000, scoped, tag = 'internal scratch']
  %s0 = inlined_call_operand.vmem [shape: f32[8,32,16], index: 0, kind: input, shape index: {}]
  %s1 = inlined_call_operand.vmem [shape: f32[96,32], index: 1, kind: input, shape index: {}]
  %s2 = inlined_call_operand.vmem [shape: f32[96,1], index: 2, kind: input, shape index: {}]
  %s3 = inlined_call_operand.vmem [shape: f32[32,32], index: 3, kind: input, shape index: {}]
  %s4 = inlined_call_operand.vmem [shape: f32[32,1], index: 4, kind: input, shape index: {}]
  %s5 = inlined_call_operand.vmem [shape: f32[8,32,16], index: 5, kind: output, shape index: {}]
  %s6 = sld [smem:[#allocation0]]
  $region53: #{attention_forward.1} parent=0
    _
  %s8 = ssub.s32 1, %s6
  %s9 = scalar_select 0, %s8, %s6
  loop: start=0, step=1, limit=10
  $region2: #{attention_forward.1} parent=0 // loop_pre_header
    _
  $region3: #{attention_forward.1} parent=0 // loop_header
    %s11 = sphi 0, %s15
    %p12 = scmp.ge.s32.totalorder %s11, 10
    %s21 = sphi 0, %s23
    %s24 = sphi 0, %s21
    %s25 = sphi 0, %s24
    %s41 = sphi 0, %s25
    %s45 = sphi 0, %s45
    %s47 = sphi 0, %s45
    %s48 = sphi 0, %s47
    %s62 = sphi 0, %s48
    %s66 = sphi 0, %s66
    %s68 = sphi 0, %s66
    %s69 = sphi 0, %s68
    %s83 = sphi 0, %s69
    %s87 = sphi 0, %s87
    %s89 = sphi 0, %s87
    %s90 = sphi 0, %s89
    %s104 = sphi 0, %s90
    %s108 = sphi 0, %s108
    %s110 = sphi 0, %s108
    %s111 = sphi 0, %s110
    %s125 = sphi 0, %s111
    %s131 = sphi 0, %s133
    %s134 = sphi 0, %s131
    %s135 = sphi 0, %s134
    %s151 = sphi 0, %s135
  $region4: #{attention_forward.1} parent=0 // loop_header_branch
    %14 = sbr.rel (%p12) target = $region8
  $region5: #{attention_forward.1} parent=0 // loop_body
    %s16 = ssub.s32 %s11, 1
    %s17 = ssub.s32 %s11, 2
    %s18 = sadd.s32 %s11, 1
    %s19 = ssub.s32 %s11, %s18
    %p20 = scmp.eq.s32.totalorder %s19, 0
    %s22 = sadd.s32 %s21, 1
    %s23 = scalar_select %p20, %s21, %s22
    %p26 = pneg %p20
    %p27 = scmp.eq.s32.totalorder %s11, 7
    %p28 = por %p26, %p27
    %p29 = scmp.ne.s32.totalorder %s21, %s24
    %p30 = scmp.eq.s32.totalorder %s11, 0
    %p31 = por %p29, %p30
    %p32 = scmp.ne.s32.totalorder %s21, %s24
    %p33 = scmp.eq.s32.totalorder %s16, 7
    %p34 = por %p32, %p33
    %p35 = scmp.ne.s32.totalorder %s24, %s25
    %p36 = scmp.eq.s32.totalorder %s16, 0
    %p37 = por %p35, %p36
    %p38 = scmp.ne.s32.totalorder %s24, %s25
    %p39 = scmp.eq.s32.totalorder %s17, 7
    %p40 = por %p38, %p39
    %p42 = scmp.ne.s32.totalorder %s25, %s41
    %p43 = scmp.eq.s32.totalorder %s17, 0
    %p44 = por %p42, %p43
    %s46 = sadd.s32 %s45, 1
    %p49 = scmp.eq.s32.totalorder %s11, 7
    %p50 = scmp.ne.s32.totalorder %s45, %s47
    %p51 = scmp.eq.s32.totalorder %s11, 0
    %p52 = por %p50, %p51
    %p53 = scmp.ne.s32.totalorder %s45, %s47
    %p54 = scmp.eq.s32.totalorder %s16, 7
    %p55 = por %p53, %p54
    %p56 = scmp.ne.s32.totalorder %s47, %s48
    %p57 = scmp.eq.s32.totalorder %s16, 0
    %p58 = por %p56, %p57
    %p59 = scmp.ne.s32.totalorder %s47, %s48
    %p60 = scmp.eq.s32.totalorder %s17, 7
    %p61 = por %p59, %p60
    %p63 = scmp.ne.s32.totalorder %s48, %s62
    %p64 = scmp.eq.s32.totalorder %s17, 0
    %p65 = por %p63, %p64
    %s67 = sadd.s32 %s66, 1
    %p70 = scmp.eq.s32.totalorder %s11, 7
    %p71 = scmp.ne.s32.totalorder %s66, %s68
    %p72 = scmp.eq.s32.totalorder %s11, 0
    %p73 = por %p71, %p72
    %p74 = scmp.ne.s32.totalorder %s66, %s68
    %p75 = scmp.eq.s32.totalorder %s16, 7
    %p76 = por %p74, %p75
    %p77 = scmp.ne.s32.totalorder %s68, %s69
    %p78 = scmp.eq.s32.totalorder %s16, 0
    %p79 = por %p77, %p78
    %p80 = scmp.ne.s32.totalorder %s68, %s69
    %p81 = scmp.eq.s32.totalorder %s17, 7
    %p82 = por %p80, %p81
    %p84 = scmp.ne.s32.totalorder %s69, %s83
    %p85 = scmp.eq.s32.totalorder %s17, 0
    %p86 = por %p84, %p85
    %s88 = sadd.s32 %s87, 1
    %p91 = scmp.eq.s32.totalorder %s11, 7
    %p92 = scmp.ne.s32.totalorder %s87, %s89
    %p93 = scmp.eq.s32.totalorder %s11, 0
    %p94 = por %p92, %p93
    %p95 = scmp.ne.s32.totalorder %s87, %s89
    %p96 = scmp.eq.s32.totalorder %s16, 7
    %p97 = por %p95, %p96
    %p98 = scmp.ne.s32.totalorder %s89, %s90
    %p99 = scmp.eq.s32.totalorder %s16, 0
    %p100 = por %p98, %p99
    %p101 = scmp.ne.s32.totalorder %s89, %s90
    %p102 = scmp.eq.s32.totalorder %s17, 7
    %p103 = por %p101, %p102
    %p105 = scmp.ne.s32.totalorder %s90, %s104
    %p106 = scmp.eq.s32.totalorder %s17, 0
    %p107 = por %p105, %p106
    %s109 = sadd.s32 %s108, 1
    %p112 = scmp.eq.s32.totalorder %s11, 7
    %p113 = scmp.ne.s32.totalorder %s108, %s110
    %p114 = scmp.eq.s32.totalorder %s11, 0
    %p115 = por %p113, %p114
    %p116 = scmp.ne.s32.totalorder %s108, %s110
    %p117 = scmp.eq.s32.totalorder %s16, 7
    %p118 = por %p116, %p117
    %p119 = scmp.ne.s32.totalorder %s110, %s111
    %p120 = scmp.eq.s32.totalorder %s16, 0
    %p121 = por %p119, %p120
    %p122 = scmp.ne.s32.totalorder %s110, %s111
    %p123 = scmp.eq.s32.totalorder %s17, 7
    %p124 = por %p122, %p123
    %p126 = scmp.ne.s32.totalorder %s111, %s125
    %p127 = scmp.eq.s32.totalorder %s17, 0
    %p128 = por %p126, %p127
    %s129 = ssub.s32 %s11, %s18
    %p130 = scmp.eq.s32.totalorder %s129, 0
    %s132 = sadd.s32 %s131, 1
    %s133 = scalar_select %p130, %s131, %s132
    %p136 = pneg %p130
    %p137 = scmp.eq.s32.totalorder %s11, 7
    %p138 = por %p136, %p137
    %p139 = scmp.ne.s32.totalorder %s131, %s134
    %p140 = scmp.eq.s32.totalorder %s11, 0
    %p141 = por %p139, %p140
    %p142 = scmp.ne.s32.totalorder %s131, %s134
    %p143 = scmp.eq.s32.totalorder %s16, 7
    %p144 = por %p142, %p143
    %p145 = scmp.ne.s32.totalorder %s134, %s135
    %p146 = scmp.eq.s32.totalorder %s16, 0
    %p147 = por %p145, %p146
    %p148 = scmp.ne.s32.totalorder %s134, %s135
    %p149 = scmp.eq.s32.totalorder %s17, 7
    %p150 = por %p148, %p149
    %p152 = scmp.ne.s32.totalorder %s135, %s151
    %p153 = scmp.eq.s32.totalorder %s17, 0
    %p154 = por %p152, %p153
    %p155 = scmp.le.s32.totalorder 1, %s11
    %p156 = scmp.lt.s32.totalorder %s11, 9
    %p157 = pnand %p155, %p156
    %p158 = pneg %p157
    // Predicated region
    $region9: #{attention_forward.1} parent=5 // pred_check
      _
    $region10: #{attention_forward.1} parent=5 // pred_check_branch
      %160 = sbr.rel (%p157) target = $region12
    $region11: #{attention_forward.1} parent=5 // pred_region
      %s161 = ssub.s32 %s11, 1
      // Predicated region
      $region13: #{attention_forward.1} parent=11 // pred_check
        %p162 = pneg %p58
      $region14: #{attention_forward.1} parent=11 // pred_check_branch
        %164 = sbr.rel (%p162) target = $region16
      $region15: #{attention_forward.1} parent=11 // pred_region
        _
      $region16: #{attention_forward.1} parent=11 // pred_fallthru
        _
      // Predicated region
      $region17: #{attention_forward.1} parent=11 // pred_check
        %p165 = pneg %p79
      $region18: #{attention_forward.1} parent=11 // pred_check_branch
        %167 = sbr.rel (%p165) target = $region20
      $region19: #{attention_forward.1} parent=11 // pred_region
        _
      $region20: #{attention_forward.1} parent=11 // pred_fallthru
        _
      // Predicated region
      $region21: #{attention_forward.1} parent=11 // pred_check
        %p168 = pneg %p100
      $region22: #{attention_forward.1} parent=11 // pred_check_branch
        %170 = sbr.rel (%p168) target = $region24
      $region23: #{attention_forward.1} parent=11 // pred_region
        _
      $region24: #{attention_forward.1} parent=11 // pred_fallthru
        _
      // Predicated region
      $region25: #{attention_forward.1} parent=11 // pred_check
        %p171 = pneg %p121
      $region26: #{attention_forward.1} parent=11 // pred_check_branch
        %173 = sbr.rel (%p171) target = $region28
      $region27: #{attention_forward.1} parent=11 // pred_region
        _
      $region28: #{attention_forward.1} parent=11 // pred_fallthru
        _
    $region12: #{attention_forward.1} parent=5 // pred_fallthru
      _
    %p174 = scmp.lt.s32.totalorder %s11, 8
    // Predicated region
    $region29: #{attention_forward.1} parent=5 // pred_check
      %p175 = pneg %p174
    $region30: #{attention_forward.1} parent=5 // pred_check_branch
      %177 = sbr.rel (%p175) target = $region32
    $region31: #{attention_forward.1} parent=5 // pred_region
      // Predicated region
      $region33: #{attention_forward.1} parent=31 // pred_check
        %p178 = pneg %p31
      $region34: #{attention_forward.1} parent=31 // pred_check_branch
        %180 = sbr.rel (%p178) target = $region36
      $region35: #{attention_forward.1} parent=31 // pred_region
        %p181 = scmp.lt.s32.totalorder %s11, 7
        %s182 = scalar_select %p181, %s11, 7
        %s183 = smul.addr %s182, 4
        %s184 = smul.addr %s183, 8
        %s185 = scalar_lea.vmem %s0, %s184
      $region36: #{attention_forward.1} parent=31 // pred_fallthru
        _
    $region32: #{attention_forward.1} parent=5 // pred_fallthru
      _
    %p186 = scmp.le.s32.totalorder 1, %s11
    %p187 = scmp.lt.s32.totalorder %s11, 9
    %p188 = pnand %p186, %p187
    %p189 = pneg %p188
    // Predicated region
    $region37: #{attention_forward.1} parent=5 // pred_check
      _
    $region38: #{attention_forward.1} parent=5 // pred_check_branch
      %191 = sbr.rel (%p188) target = $region40
    $region39: #{attention_forward.1} parent=5 // pred_region
      %s192 = ssub.s32 %s11, 1
      %p193 = scmp.lt.s32.totalorder %s16, 7
      %s194 = scalar_select %p193, %s16, 7
      %s195 = smul.addr %s194, 4
      %s196 = smul.addr %s195, 8
      %s197 = scalar_lea.vmem %s0, %s196
      %p198 = pneg %p37
      %p199 = pneg %p34
      %p200 = pneg %p58
      %p201 = pneg %p55
      %p202 = pneg %p79
      %p203 = pneg %p76
      %p204 = pneg %p100
      %p205 = pneg %p97
      %p206 = pneg %p121
      %p207 = pneg %p118
      %p208 = pneg %p147
      %p209 = pneg %p144
      %p210 = scmp.lt.s32.totalorder %s16, 7
      %s211 = scalar_select %p210, %s16, 7
      %s212 = smul.addr %s211, 4
      %s213 = smul.addr %s212, 8
      %s214 = scalar_lea.vmem %s5, %s213
      %p215 = scmp.lt.s32.totalorder %s16, 7
      %s216 = scalar_select %p215, %s16, 7
      %s217 = smul.addr %s216, 4
      %s218 = smul.addr %s217, 8
      %s219 = scalar_lea.vmem %s0, %s218
      %p220 = scmp.lt.s32.totalorder %s16, 7
      %s221 = scalar_select %p220, %s16, 7
      %s222 = smul.addr %s221, 4
      %s223 = smul.addr %s222, 8
      %s224 = scalar_lea.vmem %s5, %s223
      %v225 = vld [vmem:[%s1] sm:$0xff]
      %v226 = vld [vmem:[%s1 + $0x8] sm:$0xff]
      %v227 = vld [vmem:[%s1 + $0x10] sm:$0xff]
      %v228 = vld [vmem:[%s1 + $0x18] sm:$0xff]
      %v229 = vld [vmem:[%s1 + $0x20] sm:$0xff]
      %v230 = vld [vmem:[%s1 + $0x28] sm:$0xff]
      %v231 = vld [vmem:[%s1 + $0x30] sm:$0xff]
      %v232 = vld [vmem:[%s1 + $0x38] sm:$0xff]
      %v233 = vld [vmem:[%s1 + $0x40] sm:$0xff]
      %v234 = vld [vmem:[%s1 + $0x48] sm:$0xff]
      %v235 = vld [vmem:[%s1 + $0x50] sm:$0xff]
      %v236 = vld [vmem:[%s1 + $0x58] sm:$0xff]
      %v237 = vld [vmem:[%s2] sm:$0xff]
      %v238 = vld [vmem:[%s2 + $0x8] sm:$0xff]
      %v239 = vld [vmem:[%s2 + $0x10] sm:$0xff]
      %v240 = vld [vmem:[%s2 + $0x18] sm:$0xff]
      %v241 = vld [vmem:[%s2 + $0x20] sm:$0xff]
      %v242 = vld [vmem:[%s2 + $0x28] sm:$0xff]
      %v243 = vld [vmem:[%s2 + $0x30] sm:$0xff]
      %v244 = vld [vmem:[%s2 + $0x38] sm:$0xff]
      %v245 = vld [vmem:[%s2 + $0x40] sm:$0xff]
      %v246 = vld [vmem:[%s2 + $0x48] sm:$0xff]
      %v247 = vld [vmem:[%s2 + $0x50] sm:$0xff]
      %v248 = vld [vmem:[%s2 + $0x58] sm:$0xff]
      %v249 = vld [vmem:[%s3] sm:$0xff]
      %v250 = vld [vmem:[%s3 + $0x8] sm:$0xff]
      %v251 = vld [vmem:[%s3 + $0x10] sm:$0xff]
      %v252 = vld [vmem:[%s3 + $0x18] sm:$0xff]
      %v253 = vld [vmem:[%s4] sm:$0xff]
      %v254 = vld [vmem:[%s4 + $0x8] sm:$0xff]
      %v255 = vld [vmem:[%s4 + $0x10] sm:$0xff]
      %v256 = vld [vmem:[%s4 + $0x18] sm:$0xff]
      %v257 = vld [vmem:[%s219] sm:$0xff]
      %v258 = vld [vmem:[%s219 + $0x8] sm:$0xff]
      %v259 = vld [vmem:[%s219 + $0x10] sm:$0xff]
      %v260 = vld [vmem:[%s219 + $0x18] sm:$0xff]
      %262 = vset.pattern.permute.xlu0 0
      %263 = vperm.xlu0 %262, %v237
      %v264 = vpop.permute.xlu0 %263
      %267 = vset.pattern.permute.xlu0 0
      %268 = vperm.xlu0 %267, %v238
      %v269 = vpop.permute.xlu0 %268
      %272 = vset.pattern.permute.xlu0 0
      %273 = vperm.xlu0 %272, %v239
      %v274 = vpop.permute.xlu0 %273
      %277 = vset.pattern.permute.xlu0 0
      %278 = vperm.xlu0 %277, %v240
      %v279 = vpop.permute.xlu0 %278
      %282 = vset.pattern.permute.xlu0 0
      %283 = vperm.xlu0 %282, %v241
      %v284 = vpop.permute.xlu0 %283
      %287 = vset.pattern.permute.xlu0 0
      %288 = vperm.xlu0 %287, %v242
      %v289 = vpop.permute.xlu0 %288
      %292 = vset.pattern.permute.xlu0 0
      %293 = vperm.xlu0 %292, %v243
      %v294 = vpop.permute.xlu0 %293
      %297 = vset.pattern.permute.xlu0 0
      %298 = vperm.xlu0 %297, %v244
      %v299 = vpop.permute.xlu0 %298
      %302 = vset.pattern.permute.xlu0 0
      %303 = vperm.xlu0 %302, %v245
      %v304 = vpop.permute.xlu0 %303
      %307 = vset.pattern.permute.xlu0 0
      %308 = vperm.xlu0 %307, %v246
      %v309 = vpop.permute.xlu0 %308
      %312 = vset.pattern.permute.xlu0 0
      %313 = vperm.xlu0 %312, %v247
      %v314 = vpop.permute.xlu0 %313
      %317 = vset.pattern.permute.xlu0 0
      %318 = vperm.xlu0 %317, %v248
      %v319 = vpop.permute.xlu0 %318
      %vm321 = vcmask 261120
      %v323 = vsel %vm321, %v225, 0
      %v326 = vsel %vm321, %v226, 0
      %v329 = vsel %vm321, %v227, 0
      %v332 = vsel %vm321, %v228, 0
      %v335 = vsel %vm321, %v229, 0
      %v338 = vsel %vm321, %v230, 0
      %v341 = vsel %vm321, %v231, 0
      %v344 = vsel %vm321, %v232, 0
      %v347 = vsel %vm321, %v233, 0
      %v350 = vsel %vm321, %v234, 0
      %v353 = vsel %vm321, %v235, 0
      %v356 = vsel %vm321, %v236, 0
      %358 = vmatprep.subr.mxu0 0.0
      %359 = vmatpush1.msra.mxu0 %v257
      %360 = vmatprep.subr.mxu0 0.0
      %361 = vmatpush1.msra.mxu0 %v258
      %362 = vmatprep.subr.mxu0 0.0
      %363 = vmatpush1.msra.mxu0 %v259
      %364 = vmatprep.subr.mxu0 0.0
      %365 = vmatpush1.msra.mxu0 %v260
      %366 = vmatprep.subr.mxu0 0.0
      %367 = vmatpush1.msra.mxu0 0.0
      %368 = vmatprep.subr.mxu0 0.0
      %369 = vmatpush1.msra.mxu0 0.0
      %370 = vmatprep.subr.mxu0 0.0
      %371 = vmatpush1.msra.mxu0 0.0
      %372 = vmatprep.subr.mxu0 0.0
      %373 = vmatpush1.msra.mxu0 0.0
      %374 = vmatprep.subr.mxu0 0.0
      %375 = vmatpush1.msra.mxu0 0.0
      %376 = vmatprep.subr.mxu0 0.0
      %377 = vmatpush1.msra.mxu0 0.0
      %378 = vmatprep.subr.mxu0 0.0
      %379 = vmatpush1.msra.mxu0 0.0
      %380 = vmatprep.subr.mxu0 0.0
      %381 = vmatpush1.msra.mxu0 0.0
      %382 = vmatprep.subr.mxu0 0.0
      %383 = vmatpush1.msra.mxu0 0.0
      %384 = vmatprep.subr.mxu0 0.0
      %385 = vmatpush1.msra.mxu0 0.0
      %386 = vmatprep.subr.mxu0 0.0
      %387 = vmatpush1.msra.mxu0 0.0
      %388 = vmatprep.subr.mxu0 0.0
      %389 = vmatpush1.msra.mxu0 0.0
      %390 = vmatprep.subr.mxu0 0.0
      %391 = vmatpush1.msra.mxu0 0.0
      %392 = vmatprep.subr.mxu0 0.0
      %393 = vmatpush1.msra.mxu0 0.0
      %394 = vmatprep.subr.mxu0 0.0
      %395 = vmatpush1.msra.mxu0 0.0
      %396 = vmatprep.subr.mxu0 0.0
      %397 = vmatpush1.msra.mxu0 0.0
      %398 = vmatprep.subr.mxu0 0.0
      %399 = vmatpush1.msra.mxu0 0.0
      %400 = vmatprep.subr.mxu0 0.0
      %401 = vmatpush1.msra.mxu0 0.0
      %402 = vmatprep.subr.mxu0 0.0
      %403 = vmatpush1.msra.mxu0 0.0
      %404 = vmatprep.subr.mxu0 0.0
      %405 = vmatpush1.msra.mxu0 0.0
      %406 = vmatprep.subr.mxu0 0.0
      %407 = vmatpush1.msra.mxu0 0.0
      %408 = vmatprep.subr.mxu0 0.0
      %409 = vmatpush1.msra.mxu0 0.0
      %410 = vmatprep.subr.mxu0 0.0
      %411 = vmatpush1.msra.mxu0 0.0
      %412 = vmatprep.subr.mxu0 0.0
      %413 = vmatpush1.msra.mxu0 0.0
      %414 = vmatprep.subr.mxu0 0.0
      %415 = vmatpush1.msra.mxu0 0.0
      %416 = vmatprep.subr.mxu0 0.0
      %417 = vmatpush1.msra.mxu0 0.0
      %418 = vmatprep.subr.mxu0 0.0
      %419 = vmatpush1.msra.mxu0 0.0
      %420 = vmatprep.subr.mxu0 0.0
      %421 = vmatpush1.msra.mxu0 0.0
      %422 = vmatprep.mubr.f32.mxu0 0.0
      %423 = vmatmul.mubr.f32.gmra.mrb[0].mxu0 %v323
      %v424 = vpop.f32.mrb[0].mxu0
      %v425 = vadd.f32 %v264, %v424
      %v426 = vpop.f32.mrb[0].mxu0
      %427 = vmatprep.mubr.f32.mxu0 0.0
      %428 = vmatmul.mubr.f32.gmra.mrb[0].mxu0 %v326
      %v429 = vpop.f32.mrb[0].mxu0
      %v430 = vadd.f32 %v269, %v429
      %v431 = vpop.f32.mrb[0].mxu0
      %432 = vmatprep.mubr.f32.mxu0 0.0
      %433 = vmatmul.mubr.f32.gmra.mrb[0].mxu0 %v329
      %v434 = vpop.f32.mrb[0].mxu0
      %v435 = vadd.f32 %v274, %v434
      %v436 = vpop.f32.mrb[0].mxu0
      %437 = vmatprep.mubr.f32.mxu0 0.0
      %438 = vmatmul.mubr.f32.gmra.mrb[0].mxu0 %v332
      %v439 = vpop.f32.mrb[0].mxu0
      %v440 = vadd.f32 %v279, %v439
      %v441 = vpop.f32.mrb[0].mxu0
      %442 = vmatprep.mubr.f32.mxu0 0.0
      %443 = vmatmul.mubr.f32.gmra.mrb[0].mxu0 %v335
      %v444 = vpop.f32.mrb[0].mxu0
      %v445 = vadd.f32 %v284, %v444
      %v446 = vpop.f32.mrb[0].mxu0
      %447 = vmatprep.mubr.f32.mxu0 0.0
      %448 = vmatmul.mubr.f32.gmra.mrb[0].mxu0 %v338
      %v449 = vpop.f32.mrb[0].mxu0
      %v450 = vadd.f32 %v289, %v449
      %v451 = vpop.f32.mrb[0].mxu0
      %452 = vmatprep.mubr.f32.mxu0 0.0
      %453 = vmatmul.mubr.f32.gmra.mrb[0].mxu0 %v341
      %v454 = vpop.f32.mrb[0].mxu0
      %v455 = vadd.f32 %v294, %v454
      %v456 = vpop.f32.mrb[0].mxu0
      %457 = vmatprep.mubr.f32.mxu0 0.0
      %458 = vmatmul.mubr.f32.gmra.mrb[0].mxu0 %v344
      %v459 = vpop.f32.mrb[0].mxu0
      %v460 = vadd.f32 %v299, %v459
      %v461 = vpop.f32.mrb[0].mxu0
      %462 = vmatprep.mubr.f32.mxu0 0.0
      %463 = vmatmul.mubr.f32.gmra.mrb[0].mxu0 %v347
      %v464 = vpop.f32.mrb[0].mxu0
      %v465 = vadd.f32 %v304, %v464
      %v466 = vpop.f32.mrb[0].mxu0
      %467 = vmatprep.mubr.f32.mxu0 0.0
      %468 = vmatmul.mubr.f32.gmra.mrb[0].mxu0 %v350
      %v469 = vpop.f32.mrb[0].mxu0
      %v470 = vadd.f32 %v309, %v469
      %v471 = vpop.f32.mrb[0].mxu0
      %472 = vmatprep.mubr.f32.mxu0 0.0
      %473 = vmatmul.mubr.f32.gmra.mrb[0].mxu0 %v353
      %v474 = vpop.f32.mrb[0].mxu0
      %v475 = vadd.f32 %v314, %v474
      %v476 = vpop.f32.mrb[0].mxu0
      %477 = vmatprep.mubr.f32.mxu0 0.0
      %478 = vmatmul.mubr.f32.gmra.mrb[0].mxu0 %v356
      %v479 = vpop.f32.mrb[0].mxu0
      %v480 = vadd.f32 %v319, %v479
      %v481 = vpop.f32.mrb[0].mxu0
      %482 = vdwg.mxu0
      %483 = vxpose.xlu0.b32.start [1/16] %v425, 128
      %484 = vxpose.xlu0.b32.cont [2/16] 0.0, 128
      %485 = vxpose.xlu0.b32.cont [3/16] 0.0, 128
      %486 = vxpose.xlu0.b32.cont [4/16] 0.0, 128
      %487 = vxpose.xlu0.b32.cont [5/16] 0.0, 128
      %488 = vxpose.xlu0.b32.cont [6/16] 0.0, 128
      %489 = vxpose.xlu0.b32.cont [7/16] 0.0, 128
      %490 = vxpose.xlu0.b32.cont [8/16] 0.0, 128
      %491 = vxpose.xlu0.b32.cont [9/16] 0.0, 128
      %492 = vxpose.xlu0.b32.cont [10/16] 0.0, 128
      %493 = vxpose.xlu0.b32.cont [11/16] 0.0, 128
      %494 = vxpose.xlu0.b32.cont [12/16] 0.0, 128
      %495 = vxpose.xlu0.b32.cont [13/16] 0.0, 128
      %496 = vxpose.xlu0.b32.cont [14/16] 0.0, 128
      %497 = vxpose.xlu0.b32.cont [15/16] 0.0, 128
      %498 = vxpose.xlu0.b32.end [16/16] 0.0, 128
      %v499 = vpop.trf.xlu0
      %v500 = vpop.trf.xlu0
      %v501 = vpop.trf.xlu0
      %v502 = vpop.trf.xlu0
      %v503 = vpop.trf.xlu0
      %v504 = vpop.trf.xlu0
      %v505 = vpop.trf.xlu0
      %v506 = vpop.trf.xlu0
      %v507 = vpop.trf.xlu0
      %v508 = vpop.trf.xlu0
      %v509 = vpop.trf.xlu0
      %v510 = vpop.trf.xlu0
      %v511 = vpop.trf.xlu0
      %v512 = vpop.trf.xlu0
      %v513 = vpop.trf.xlu0
      %v514 = vpop.trf.xlu0
      %vm515 = vcmask 64512
      %v517 = vsel %vm515, %v499, 0
      %v520 = vsel %vm515, %v500, 0
      %522 = vmatprep.subr.mxu0 0.0
      %523 = vmatpush1.msra.mxu0 %v445
      %524 = vmatprep.subr.mxu0 0.0
      %525 = vmatpush1.msra.mxu0 0.0
      %526 = vmatprep.subr.mxu0 0.0
      %527 = vmatpush1.msra.mxu0 0.0
      %528 = vmatprep.subr.mxu0 0.0
      %529 = vmatpush1.msra.mxu0 0.0
      %530 = vmatprep.subr.mxu0 0.0
      %531 = vmatpush1.msra.mxu0 0.0
      %532 = vmatprep.subr.mxu0 0.0
      %533 = vmatpush1.msra.mxu0 0.0
      %534 = vmatprep.subr.mxu0 0.0
      %535 = vmatpush1.msra.mxu0 0.0
      %536 = vmatprep.subr.mxu0 0.0
      %537 = vmatpush1.msra.mxu0 0.0
      %538 = vmatprep.subr.mxu0 0.0
      %539 = vmatpush1.msra.mxu0 0.0
      %540 = vmatprep.subr.mxu0 0.0
      %541 = vmatpush1.msra.mxu0 0.0
      %542 = vmatprep.subr.mxu0 0.0
      %543 = vmatpush1.msra.mxu0 0.0
      %544 = vmatprep.subr.mxu0 0.0
      %545 = vmatpush1.msra.mxu0 0.0
      %546 = vmatprep.subr.mxu0 0.0
      %547 = vmatpush1.msra.mxu0 0.0
      %548 = vmatprep.subr.mxu0 0.0
      %549 = vmatpush1.msra.mxu0 0.0
      %550 = vmatprep.subr.mxu0 0.0
      %551 = vmatpush1.msra.mxu0 0.0
      %552 = vmatprep.subr.mxu0 0.0
      %553 = vmatpush1.msra.mxu0 0.0
      %554 = vmatprep.subr.mxu0 0.0
      %555 = vmatpush1.msra.mxu0 0.0
      %556 = vmatprep.subr.mxu0 0.0
      %557 = vmatpush1.msra.mxu0 0.0
      %558 = vmatprep.subr.mxu0 0.0
      %559 = vmatpush1.msra.mxu0 0.0
      %560 = vmatprep.subr.mxu0 0.0
      %561 = vmatpush1.msra.mxu0 0.0
      %562 = vmatprep.subr.mxu0 0.0
      %563 = vmatpush1.msra.mxu0 0.0
      %564 = vmatprep.subr.mxu0 0.0
      %565 = vmatpush1.msra.mxu0 0.0
      %566 = vmatprep.subr.mxu0 0.0
      %567 = vmatpush1.msra.mxu0 0.0
      %568 = vmatprep.subr.mxu0 0.0
      %569 = vmatpush1.msra.mxu0 0.0
      %570 = vmatprep.subr.mxu0 0.0
      %571 = vmatpush1.msra.mxu0 0.0
      %572 = vmatprep.subr.mxu0 0.0
      %573 = vmatpush1.msra.mxu0 0.0
      %574 = vmatprep.subr.mxu0 0.0
      %575 = vmatpush1.msra.mxu0 0.0
      %576 = vmatprep.subr.mxu0 0.0
      %577 = vmatpush1.msra.mxu0 0.0
      %578 = vmatprep.subr.mxu0 0.0
      %579 = vmatpush1.msra.mxu0 0.0
      %580 = vmatprep.subr.mxu0 0.0
      %581 = vmatpush1.msra.mxu0 0.0
      %582 = vmatprep.subr.mxu0 0.0
      %583 = vmatpush1.msra.mxu0 0.0
      %584 = vmatprep.subr.mxu0 0.0
      %585 = vmatpush1.msra.mxu0 0.0
      %586 = vmatprep.mubr.f32.mxu0 0.0
      %587 = vmatmul.mubr.f32.gmra.mrb[0].mxu0 %v517
      %v588 = vpop.f32.mrb[0].mxu0
      %v589 = vadd.f32 0.0, %v588
      %v590 = vpop.f32.mrb[0].mxu0
      %591 = vmatprep.mubr.f32.mxu0 0.0
      %592 = vmatmul.mubr.f32.gmra.mrb[0].mxu0 %v520
      %v593 = vpop.f32.mrb[0].mxu0
      %v594 = vadd.f32 0.0, %v593
      %v595 = vpop.f32.mrb[0].mxu0
      %596 = vdwg.mxu0
      %597 = vxpose.xlu0.b32.start [1/16] %v430, 128
      %598 = vxpose.xlu0.b32.cont [2/16] 0.0, 128
      %599 = vxpose.xlu0.b32.cont [3/16] 0.0, 128
      %600 = vxpose.xlu0.b32.cont [4/16] 0.0, 128
      %601 = vxpose.xlu0.b32.cont [5/16] 0.0, 128
      %602 = vxpose.xlu0.b32.cont [6/16] 0.0, 128
      %603 = vxpose.xlu0.b32.cont [7/16] 0.0, 128
      %604 = vxpose.xlu0.b32.cont [8/16] 0.0, 128
      %605 = vxpose.xlu0.b32.cont [9/16] 0.0, 128
      %606 = vxpose.xlu0.b32.cont [10/16] 0.0, 128
      %607 = vxpose.xlu0.b32.cont [11/16] 0.0, 128
      %608 = vxpose.xlu0.b32.cont [12/16] 0.0, 128
      %609 = vxpose.xlu0.b32.cont [13/16] 0.0, 128
      %610 = vxpose.xlu0.b32.cont [14/16] 0.0, 128
      %611 = vxpose.xlu0.b32.cont [15/16] 0.0, 128
      %612 = vxpose.xlu0.b32.end [16/16] 0.0, 128
      %v613 = vpop.trf.xlu0
      %v614 = vpop.trf.xlu0
      %v615 = vpop.trf.xlu0
      %v616 = vpop.trf.xlu0
      %v617 = vpop.trf.xlu0
      %v618 = vpop.trf.xlu0
      %v619 = vpop.trf.xlu0
      %v620 = vpop.trf.xlu0
      %v621 = vpop.trf.xlu0
      %v622 = vpop.trf.xlu0
      %v623 = vpop.trf.xlu0
      %v624 = vpop.trf.xlu0
      %v625 = vpop.trf.xlu0
      %v626 = vpop.trf.xlu0
      %v627 = vpop.trf.xlu0
      %v628 = vpop.trf.xlu0
      %v630 = vsel %vm515, %v613, 0
      %v633 = vsel %vm515, %v614, 0
      %635 = vmatprep.subr.mxu0 0.0
      %636 = vmatpush1.msra.mxu0 %v450
      %637 = vmatprep.subr.mxu0 0.0
      %638 = vmatpush1.msra.mxu0 0.0
      %639 = vmatprep.subr.mxu0 0.0
      %640 = vmatpush1.msra.mxu0 0.0
      %641 = vmatprep.subr.mxu0 0.0
      %642 = vmatpush1.msra.mxu0 0.0
      %643 = vmatprep.subr.mxu0 0.0
      %644 = vmatpush1.msra.mxu0 0.0
      %645 = vmatprep.subr.mxu0 0.0
      %646 = vmatpush1.msra.mxu0 0.0
      %647 = vmatprep.subr.mxu0 0.0
      %648 = vmatpush1.msra.mxu0 0.0
      %649 = vmatprep.subr.mxu0 0.0
      %650 = vmatpush1.msra.mxu0 0.0
      %651 = vmatprep.subr.mxu0 0.0
      %652 = vmatpush1.msra.mxu0 0.0
      %653 = vmatprep.subr.mxu0 0.0
      %654 = vmatpush1.msra.mxu0 0.0
      %655 = vmatprep.subr.mxu0 0.0
      %656 = vmatpush1.msra.mxu0 0.0
      %657 = vmatprep.subr.mxu0 0.0
      %658 = vmatpush1.msra.mxu0 0.0
      %659 = vmatprep.subr.mxu0 0.0
      %660 = vmatpush1.msra.mxu0 0.0
      %661 = vmatprep.subr.mxu0 0.0
      %662 = vmatpush1.msra.mxu0 0.0
      %663 = vmatprep.subr.mxu0 0.0
      %664 = vmatpush1.msra.mxu0 0.0
      %665 = vmatprep.subr.mxu0 0.0
      %666 = vmatpush1.msra.mxu0 0.0
      %667 = vmatprep.subr.mxu0 0.0
      %668 = vmatpush1.msra.mxu0 0.0
      %669 = vmatprep.subr.mxu0 0.0
      %670 = vmatpush1.msra.mxu0 0.0
      %671 = vmatprep.subr.mxu0 0.0
      %672 = vmatpush1.msra.mxu0 0.0
      %673 = vmatprep.subr.mxu0 0.0
      %674 = vmatpush1.msra.mxu0 0.0
      %675 = vmatprep.subr.mxu0 0.0
      %676 = vmatpush1.msra.mxu0 0.0
      %677 = vmatprep.subr.mxu0 0.0
      %678 = vmatpush1.msra.mxu0 0.0
      %679 = vmatprep.subr.mxu0 0.0
      %680 = vmatpush1.msra.mxu0 0.0
      %681 = vmatprep.subr.mxu0 0.0
      %682 = vmatpush1.msra.mxu0 0.0
      %683 = vmatprep.subr.mxu0 0.0
      %684 = vmatpush1.msra.mxu0 0.0
      %685 = vmatprep.subr.mxu0 0.0
      %686 = vmatpush1.msra.mxu0 0.0
      %687 = vmatprep.subr.mxu0 0.0
      %688 = vmatpush1.msra.mxu0 0.0
      %689 = vmatprep.subr.mxu0 0.0
      %690 = vmatpush1.msra.mxu0 0.0
      %691 = vmatprep.subr.mxu0 0.0
      %692 = vmatpush1.msra.mxu0 0.0
      %693 = vmatprep.subr.mxu0 0.0
      %694 = vmatpush1.msra.mxu0 0.0
      %695 = vmatprep.subr.mxu0 0.0
      %696 = vmatpush1.msra.mxu0 0.0
      %697 = vmatprep.subr.mxu0 0.0
      %698 = vmatpush1.msra.mxu0 0.0
      %699 = vmatprep.mubr.f32.mxu0 0.0
      %700 = vmatmul.mubr.f32.gmra.mrb[0].mxu0 %v630
      %v701 = vpop.f32.mrb[0].mxu0
      %v702 = vadd.f32 0.0, %v701
      %v703 = vpop.f32.mrb[0].mxu0
      %704 = vmatprep.mubr.f32.mxu0 0.0
      %705 = vmatmul.mubr.f32.gmra.mrb[0].mxu0 %v633
      %v706 = vpop.f32.mrb[0].mxu0
      %v707 = vadd.f32 0.0, %v706
      %v708 = vpop.f32.mrb[0].mxu0
      %709 = vdwg.mxu0
      %710 = vxpose.xlu0.b32.start [1/16] %v435, 128
      %711 = vxpose.xlu0.b32.cont [2/16] 0.0, 128
      %712 = vxpose.xlu0.b32.cont [3/16] 0.0, 128
      %713 = vxpose.xlu0.b32.cont [4/16] 0.0, 128
      %714 = vxpose.xlu0.b32.cont [5/16] 0.0, 128
      %715 = vxpose.xlu0.b32.cont [6/16] 0.0, 128
      %716 = vxpose.xlu0.b32.cont [7/16] 0.0, 128
      %717 = vxpose.xlu0.b32.cont [8/16] 0.0, 128
      %718 = vxpose.xlu0.b32.cont [9/16] 0.0, 128
      %719 = vxpose.xlu0.b32.cont [10/16] 0.0, 128
      %720 = vxpose.xlu0.b32.cont [11/16] 0.0, 128
      %721 = vxpose.xlu0.b32.cont [12/16] 0.0, 128
      %722 = vxpose.xlu0.b32.cont [13/16] 0.0, 128
      %723 = vxpose.xlu0.b32.cont [14/16] 0.0, 128
      %724 = vxpose.xlu0.b32.cont [15/16] 0.0, 128
      %725 = vxpose.xlu0.b32.end [16/16] 0.0, 128
      %v726 = vpop.trf.xlu0
      %v727 = vpop.trf.xlu0
      %v728 = vpop.trf.xlu0
      %v729 = vpop.trf.xlu0
      %v730 = vpop.trf.xlu0
      %v731 = vpop.trf.xlu0
      %v732 = vpop.trf.xlu0
      %v733 = vpop.trf.xlu0
      %v734 = vpop.trf.xlu0
      %v735 = vpop.trf.xlu0
      %v736 = vpop.trf.xlu0
      %v737 = vpop.trf.xlu0
      %v738 = vpop.trf.xlu0
      %v739 = vpop.trf.xlu0
      %v740 = vpop.trf.xlu0
      %v741 = vpop.trf.xlu0
      %v743 = vsel %vm515, %v726, 0
      %v746 = vsel %vm515, %v727, 0
      %748 = vmatprep.subr.mxu0 0.0
      %749 = vmatpush1.msra.mxu0 %v455
      %750 = vmatprep.subr.mxu0 0.0
      %751 = vmatpush1.msra.mxu0 0.0
      %752 = vmatprep.subr.mxu0 0.0
      %753 = vmatpush1.msra.mxu0 0.0
      %754 = vmatprep.subr.mxu0 0.0
      %755 = vmatpush1.msra.mxu0 0.0
      %756 = vmatprep.subr.mxu0 0.0
      %757 = vmatpush1.msra.mxu0 0.0
      %758 = vmatprep.subr.mxu0 0.0
      %759 = vmatpush1.msra.mxu0 0.0
      %760 = vmatprep.subr.mxu0 0.0
      %761 = vmatpush1.msra.mxu0 0.0
      %762 = vmatprep.subr.mxu0 0.0
      %763 = vmatpush1.msra.mxu0 0.0
      %764 = vmatprep.subr.mxu0 0.0
      %765 = vmatpush1.msra.mxu0 0.0
      %766 = vmatprep.subr.mxu0 0.0
      %767 = vmatpush1.msra.mxu0 0.0
      %768 = vmatprep.subr.mxu0 0.0
      %769 = vmatpush1.msra.mxu0 0.0
      %770 = vmatprep.subr.mxu0 0.0
      %771 = vmatpush1.msra.mxu0 0.0
      %772 = vmatprep.subr.mxu0 0.0
      %773 = vmatpush1.msra.mxu0 0.0
      %774 = vmatprep.subr.mxu0 0.0
      %775 = vmatpush1.msra.mxu0 0.0
      %776 = vmatprep.subr.mxu0 0.0
      %777 = vmatpush1.msra.mxu0 0.0
      %778 = vmatprep.subr.mxu0 0.0
      %779 = vmatpush1.msra.mxu0 0.0
      %780 = vmatprep.subr.mxu0 0.0
      %781 = vmatpush1.msra.mxu0 0.0
      %782 = vmatprep.subr.mxu0 0.0
      %783 = vmatpush1.msra.mxu0 0.0
      %784 = vmatprep.subr.mxu0 0.0
      %785 = vmatpush1.msra.mxu0 0.0
      %786 = vmatprep.subr.mxu0 0.0
      %787 = vmatpush1.msra.mxu0 0.0
      %788 = vmatprep.subr.mxu0 0.0
      %789 = vmatpush1.msra.mxu0 0.0
      %790 = vmatprep.subr.mxu0 0.0
      %791 = vmatpush1.msra.mxu0 0.0
      %792 = vmatprep.subr.mxu0 0.0
      %793 = vmatpush1.msra.mxu0 0.0
      %794 = vmatprep.subr.mxu0 0.0
      %795 = vmatpush1.msra.mxu0 0.0
      %796 = vmatprep.subr.mxu0 0.0
      %797 = vmatpush1.msra.mxu0 0.0
      %798 = vmatprep.subr.mxu0 0.0
      %799 = vmatpush1.msra.mxu0 0.0
      %800 = vmatprep.subr.mxu0 0.0
      %801 = vmatpush1.msra.mxu0 0.0
      %802 = vmatprep.subr.mxu0 0.0
      %803 = vmatpush1.msra.mxu0 0.0
      %804 = vmatprep.subr.mxu0 0.0
      %805 = vmatpush1.msra.mxu0 0.0
      %806 = vmatprep.subr.mxu0 0.0
      %807 = vmatpush1.msra.mxu0 0.0
      %808 = vmatprep.subr.mxu0 0.0
      %809 = vmatpush1.msra.mxu0 0.0
      %810 = vmatprep.subr.mxu0 0.0
      %811 = vmatpush1.msra.mxu0 0.0
      %812 = vmatprep.mubr.f32.mxu0 0.0
      %813 = vmatmul.mubr.f32.gmra.mrb[0].mxu0 %v743
      %v814 = vpop.f32.mrb[0].mxu0
      %v815 = vadd.f32 0.0, %v814
      %v816 = vpop.f32.mrb[0].mxu0
      %817 = vmatprep.mubr.f32.mxu0 0.0
      %818 = vmatmul.mubr.f32.gmra.mrb[0].mxu0 %v746
      %v819 = vpop.f32.mrb[0].mxu0
      %v820 = vadd.f32 0.0, %v819
      %v821 = vpop.f32.mrb[0].mxu0
      %822 = vdwg.mxu0
      %823 = vxpose.xlu0.b32.start [1/16] %v440, 128
      %824 = vxpose.xlu0.b32.cont [2/16] 0.0, 128
      %825 = vxpose.xlu0.b32.cont [3/16] 0.0, 128
      %826 = vxpose.xlu0.b32.cont [4/16] 0.0, 128
      %827 = vxpose.xlu0.b32.cont [5/16] 0.0, 128
      %828 = vxpose.xlu0.b32.cont [6/16] 0.0, 128
      %829 = vxpose.xlu0.b32.cont [7/16] 0.0, 128
      %830 = vxpose.xlu0.b32.cont [8/16] 0.0, 128
      %831 = vxpose.xlu0.b32.cont [9/16] 0.0, 128
      %832 = vxpose.xlu0.b32.cont [10/16] 0.0, 128
      %833 = vxpose.xlu0.b32.cont [11/16] 0.0, 128
      %834 = vxpose.xlu0.b32.cont [12/16] 0.0, 128
      %835 = vxpose.xlu0.b32.cont [13/16] 0.0, 128
      %836 = vxpose.xlu0.b32.cont [14/16] 0.0, 128
      %837 = vxpose.xlu0.b32.cont [15/16] 0.0, 128
      %838 = vxpose.xlu0.b32.end [16/16] 0.0, 128
      %v839 = vpop.trf.xlu0
      %v840 = vpop.trf.xlu0
      %v841 = vpop.trf.xlu0
      %v842 = vpop.trf.xlu0
      %v843 = vpop.trf.xlu0
      %v844 = vpop.trf.xlu0
      %v845 = vpop.trf.xlu0
      %v846 = vpop.trf.xlu0
      %v847 = vpop.trf.xlu0
      %v848 = vpop.trf.xlu0
      %v849 = vpop.trf.xlu0
      %v850 = vpop.trf.xlu0
      %v851 = vpop.trf.xlu0
      %v852 = vpop.trf.xlu0
      %v853 = vpop.trf.xlu0
      %v854 = vpop.trf.xlu0
      %v856 = vsel %vm515, %v839, 0
      %v859 = vsel %vm515, %v840, 0
      %861 = vmatprep.subr.mxu0 0.0
      %862 = vmatpush1.msra.mxu0 %v460
      %863 = vmatprep.subr.mxu0 0.0
      %864 = vmatpush1.msra.mxu0 0.0
      %865 = vmatprep.subr.mxu0 0.0
      %866 = vmatpush1.msra.mxu0 0.0
      %867 = vmatprep.subr.mxu0 0.0
      %868 = vmatpush1.msra.mxu0 0.0
      %869 = vmatprep.subr.mxu0 0.0
      %870 = vmatpush1.msra.mxu0 0.0
      %871 = vmatprep.subr.mxu0 0.0
      %872 = vmatpush1.msra.mxu0 0.0
      %873 = vmatprep.subr.mxu0 0.0
      %874 = vmatpush1.msra.mxu0 0.0
      %875 = vmatprep.subr.mxu0 0.0
      %876 = vmatpush1.msra.mxu0 0.0
      %877 = vmatprep.subr.mxu0 0.0
      %878 = vmatpush1.msra.mxu0 0.0
      %879 = vmatprep.subr.mxu0 0.0
      %880 = vmatpush1.msra.mxu0 0.0
      %881 = vmatprep.subr.mxu0 0.0
      %882 = vmatpush1.msra.mxu0 0.0
      %883 = vmatprep.subr.mxu0 0.0
      %884 = vmatpush1.msra.mxu0 0.0
      %885 = vmatprep.subr.mxu0 0.0
      %886 = vmatpush1.msra.mxu0 0.0
      %887 = vmatprep.subr.mxu0 0.0
      %888 = vmatpush1.msra.mxu0 0.0
      %889 = vmatprep.subr.mxu0 0.0
      %890 = vmatpush1.msra.mxu0 0.0
      %891 = vmatprep.subr.mxu0 0.0
      %892 = vmatpush1.msra.mxu0 0.0
      %893 = vmatprep.subr.mxu0 0.0
      %894 = vmatpush1.msra.mxu0 0.0
      %895 = vmatprep.subr.mxu0 0.0
      %896 = vmatpush1.msra.mxu0 0.0
      %897 = vmatprep.subr.mxu0 0.0
      %898 = vmatpush1.msra.mxu0 0.0
      %899 = vmatprep.subr.mxu0 0.0
      %900 = vmatpush1.msra.mxu0 0.0
      %901 = vmatprep.subr.mxu0 0.0
      %902 = vmatpush1.msra.mxu0 0.0
      %903 = vmatprep.subr.mxu0 0.0
      %904 = vmatpush1.msra.mxu0 0.0
      %905 = vmatprep.subr.mxu0 0.0
      %906 = vmatpush1.msra.mxu0 0.0
      %907 = vmatprep.subr.mxu0 0.0
      %908 = vmatpush1.msra.mxu0 0.0
      %909 = vmatprep.subr.mxu0 0.0
      %910 = vmatpush1.msra.mxu0 0.0
      %911 = vmatprep.subr.mxu0 0.0
      %912 = vmatpush1.msra.mxu0 0.0
      %913 = vmatprep.subr.mxu0 0.0
      %914 = vmatpush1.msra.mxu0 0.0
      %915 = vmatprep.subr.mxu0 0.0
      %916 = vmatpush1.msra.mxu0 0.0
      %917 = vmatprep.subr.mxu0 0.0
      %918 = vmatpush1.msra.mxu0 0.0
      %919 = vmatprep.subr.mxu0 0.0
      %920 = vmatpush1.msra.mxu0 0.0
      %921 = vmatprep.subr.mxu0 0.0
      %922 = vmatpush1.msra.mxu0 0.0
      %923 = vmatprep.subr.mxu0 0.0
      %924 = vmatpush1.msra.mxu0 0.0
      %925 = vmatprep.mubr.f32.mxu0 0.0
      %926 = vmatmul.mubr.f32.gmra.mrb[0].mxu0 %v856
      %v927 = vpop.f32.mrb[0].mxu0
      %v928 = vadd.f32 0.0, %v927
      %v929 = vpop.f32.mrb[0].mxu0
      %930 = vmatprep.mubr.f32.mxu0 0.0
      %931 = vmatmul.mubr.f32.gmra.mrb[0].mxu0 %v859
      %v932 = vpop.f32.mrb[0].mxu0
      %v933 = vadd.f32 0.0, %v932
      %v934 = vpop.f32.mrb[0].mxu0
      %935 = vdwg.mxu0
      %vm936 = vcmask 130048
      %v937 = vsel %vm936, %v589, -inf
      %938 = vmax.xlane.f32.xlu0 %v937
      %v939 = vpop.xlane.xlu0 %938
      %v940 = vsel %vm936, %v594, -inf
      %941 = vmax.xlane.f32.xlu0 %v940
      %v942 = vpop.xlane.xlu0 %941
      %v943 = vsel %vm936, %v702, -inf
      %944 = vmax.xlane.f32.xlu0 %v943
      %v945 = vpop.xlane.xlu0 %944
      %v946 = vsel %vm936, %v707, -inf
      %947 = vmax.xlane.f32.xlu0 %v946
      %v948 = vpop.xlane.xlu0 %947
      %v949 = vsel %vm936, %v815, -inf
      %950 = vmax.xlane.f32.xlu0 %v949
      %v951 = vpop.xlane.xlu0 %950
      %v952 = vsel %vm936, %v820, -inf
      %953 = vmax.xlane.f32.xlu0 %v952
      %v954 = vpop.xlane.xlu0 %953
      %v955 = vsel %vm936, %v928, -inf
      %956 = vmax.xlane.f32.xlu0 %v955
      %v957 = vpop.xlane.xlu0 %956
      %v958 = vsel %vm936, %v933, -inf
      %959 = vmax.xlane.f32.xlu0 %v958
      %v960 = vpop.xlane.xlu0 %959
      %v961 = vsub.f32 %v589, %v939
      %v962 = vsub.f32 %v594, %v942
      %v963 = vsub.f32 %v702, %v945
      %v964 = vsub.f32 %v707, %v948
      %v965 = vsub.f32 %v815, %v951
      %v966 = vsub.f32 %v820, %v954
      %v967 = vsub.f32 %v928, %v957
      %v968 = vsub.f32 %v933, %v960
      %v969 = vmul.f32 %v961, 1.442695
      %v970 = vpow.pop %v969
      %v971 = vmul.f32 %v962, 1.442695
      %v972 = vpow.pop %v971
      %v973 = vmul.f32 %v963, 1.442695
      %v974 = vpow.pop %v973
      %v975 = vmul.f32 %v964, 1.442695
      %v976 = vpow.pop %v975
      %v977 = vmul.f32 %v965, 1.442695
      %v978 = vpow.pop %v977
      %v979 = vmul.f32 %v966, 1.442695
      %v980 = vpow.pop %v979
      %v981 = vmul.f32 %v967, 1.442695
      %v982 = vpow.pop %v981
      %v983 = vmul.f32 %v968, 1.442695
      %v984 = vpow.pop %v983
      %v985 = vsel %vm936, %v970, 0.0
      %986 = vadd.xlane.f32.xlu0 %v985
      %v987 = vpop.xlane.xlu0 %986
      %v988 = vsel %vm936, %v972, 0.0
      %989 = vadd.xlane.f32.xlu0 %v988
      %v990 = vpop.xlane.xlu0 %989
      %v991 = vsel %vm936, %v974, 0.0
      %992 = vadd.xlane.f32.xlu0 %v991
      %v993 = vpop.xlane.xlu0 %992
      %v994 = vsel %vm936, %v976, 0.0
      %995 = vadd.xlane.f32.xlu0 %v994
      %v996 = vpop.xlane.xlu0 %995
      %v997 = vsel %vm936, %v978, 0.0
      %998 = vadd.xlane.f32.xlu0 %v997
      %v999 = vpop.xlane.xlu0 %998
      %v1000 = vsel %vm936, %v980, 0.0
      %1001 = vadd.xlane.f32.xlu0 %v1000
      %v1002 = vpop.xlane.xlu0 %1001
      %v1003 = vsel %vm936, %v982, 0.0
      %1004 = vadd.xlane.f32.xlu0 %v1003
      %v1005 = vpop.xlane.xlu0 %1004
      %v1006 = vsel %vm936, %v984, 0.0
      %1007 = vadd.xlane.f32.xlu0 %v1006
      %v1008 = vpop.xlane.xlu0 %1007
      %v1009 = vrcp.pop %v987
      %v1010 = vrcp.pop %v990
      %v1011 = vrcp.pop %v993
      %v1012 = vrcp.pop %v996
      %v1013 = vrcp.pop %v999
      %v1014 = vrcp.pop %v1002
      %v1015 = vrcp.pop %v1005
      %v1016 = vrcp.pop %v1008
      %v1017 = vmul.f32 %v970, %v1009
      %v1018 = vmul.f32 %v972, %v1010
      %v1019 = vmul.f32 %v974, %v1011
      %v1020 = vmul.f32 %v976, %v1012
      %v1021 = vmul.f32 %v978, %v1013
      %v1022 = vmul.f32 %v980, %v1014
      %v1023 = vmul.f32 %v982, %v1015
      %v1024 = vmul.f32 %v984, %v1016
      %v1026 = vsel %vm936, %v465, 0
      %v1029 = vsel %vm936, %v1017, 0
      %v1032 = vsel %vm936, %v1018, 0
      %1034 = vmatprep.subr.mxu0 0.0
      %1035 = vmatpush1.xpose.msra.mxu0 %v1029
      %1036 = vmatprep.subr.mxu0 0.0
      %1037 = vmatpush1.xpose.msra.mxu0 %v1032
      %1038 = vmatprep.subr.mxu0 0.0
      %1039 = vmatpush1.xpose.msra.mxu0 0.0
      %1040 = vmatprep.subr.mxu0 0.0
      %1041 = vmatpush1.xpose.msra.mxu0 0.0
      %1042 = vmatprep.subr.mxu0 0.0
      %1043 = vmatpush1.xpose.msra.mxu0 0.0
      %1044 = vmatprep.subr.mxu0 0.0
      %1045 = vmatpush1.xpose.msra.mxu0 0.0
      %1046 = vmatprep.subr.mxu0 0.0
      %1047 = vmatpush1.xpose.msra.mxu0 0.0
      %1048 = vmatprep.subr.mxu0 0.0
      %1049 = vmatpush1.xpose.msra.mxu0 0.0
      %1050 = vmatprep.subr.mxu0 0.0
      %1051 = vmatpush1.xpose.msra.mxu0 0.0
      %1052 = vmatprep.subr.mxu0 0.0
      %1053 = vmatpush1.xpose.msra.mxu0 0.0
      %1054 = vmatprep.subr.mxu0 0.0
      %1055 = vmatpush1.xpose.msra.mxu0 0.0
      %1056 = vmatprep.subr.mxu0 0.0
      %1057 = vmatpush1.xpose.msra.mxu0 0.0
      %1058 = vmatprep.subr.mxu0 0.0
      %1059 = vmatpush1.xpose.msra.mxu0 0.0
      %1060 = vmatprep.subr.mxu0 0.0
      %1061 = vmatpush1.xpose.msra.mxu0 0.0
      %1062 = vmatprep.subr.mxu0 0.0
      %1063 = vmatpush1.xpose.msra.mxu0 0.0
      %1064 = vmatprep.subr.mxu0 0.0
      %1065 = vmatpush1.xpose.msra.mxu0 0.0
      %1066 = vmatprep.subr.mxu0 0.0
      %1067 = vmatpush1.xpose.msra.mxu0 0.0
      %1068 = vmatprep.subr.mxu0 0.0
      %1069 = vmatpush1.xpose.msra.mxu0 0.0
      %1070 = vmatprep.subr.mxu0 0.0
      %1071 = vmatpush1.xpose.msra.mxu0 0.0
      %1072 = vmatprep.subr.mxu0 0.0
      %1073 = vmatpush1.xpose.msra.mxu0 0.0
      %1074 = vmatprep.subr.mxu0 0.0
      %1075 = vmatpush1.xpose.msra.mxu0 0.0
      %1076 = vmatprep.subr.mxu0 0.0
      %1077 = vmatpush1.xpose.msra.mxu0 0.0
      %1078 = vmatprep.subr.mxu0 0.0
      %1079 = vmatpush1.xpose.msra.mxu0 0.0
      %1080 = vmatprep.subr.mxu0 0.0
      %1081 = vmatpush1.xpose.msra.mxu0 0.0
      %1082 = vmatprep.subr.mxu0 0.0
      %1083 = vmatpush1.xpose.msra.mxu0 0.0
      %1084 = vmatprep.subr.mxu0 0.0
      %1085 = vmatpush1.xpose.msra.mxu0 0.0
      %1086 = vmatprep.subr.mxu0 0.0
      %1087 = vmatpush1.xpose.msra.mxu0 0.0
      %1088 = vmatprep.subr.mxu0 0.0
      %1089 = vmatpush1.xpose.msra.mxu0 0.0
      %1090 = vmatprep.subr.mxu0 0.0
      %1091 = vmatpush1.xpose.msra.mxu0 0.0
      %1092 = vmatprep.subr.mxu0 0.0
      %1093 = vmatpush1.xpose.msra.mxu0 0.0
      %1094 = vmatprep.subr.mxu0 0.0
      %1095 = vmatpush1.xpose.msra.mxu0 0.0
      %1096 = vmatprep.subr.mxu0 0.0
      %1097 = vmatpush1.xpose.msra.mxu0 0.0
      %1098 = vmatprep.mubr.f32.mxu0 0.0
      %1099 = vmatmul.mubr.f32.gmra.mrb[0].mxu0 %v1026
      %v1100 = vpop.f32.mrb[0].mxu0
      %v1101 = vadd.f32 0.0, %v1100
      %v1102 = vpop.f32.mrb[0].mxu0
      %1103 = vdwg.mxu0
      %v1105 = vsel %vm936, %v470, 0
      %v1108 = vsel %vm936, %v1019, 0
      %v1111 = vsel %vm936, %v1020, 0
      %1113 = vmatprep.subr.mxu0 0.0
      %1114 = vmatpush1.xpose.msra.mxu0 %v1108
      %1115 = vmatprep.subr.mxu0 0.0
      %1116 = vmatpush1.xpose.msra.mxu0 %v1111
      %1117 = vmatprep.subr.mxu0 0.0
      %1118 = vmatpush1.xpose.msra.mxu0 0.0
      %1119 = vmatprep.subr.mxu0 0.0
      %1120 = vmatpush1.xpose.msra.mxu0 0.0
      %1121 = vmatprep.subr.mxu0 0.0
      %1122 = vmatpush1.xpose.msra.mxu0 0.0
      %1123 = vmatprep.subr.mxu0 0.0
      %1124 = vmatpush1.xpose.msra.mxu0 0.0
      %1125 = vmatprep.subr.mxu0 0.0
      %1126 = vmatpush1.xpose.msra.mxu0 0.0
      %1127 = vmatprep.subr.mxu0 0.0
      %1128 = vmatpush1.xpose.msra.mxu0 0.0
      %1129 = vmatprep.subr.mxu0 0.0
      %1130 = vmatpush1.xpose.msra.mxu0 0.0
      %1131 = vmatprep.subr.mxu0 0.0
      %1132 = vmatpush1.xpose.msra.mxu0 0.0
      %1133 = vmatprep.subr.mxu0 0.0
      %1134 = vmatpush1.xpose.msra.mxu0 0.0
      %1135 = vmatprep.subr.mxu0 0.0
      %1136 = vmatpush1.xpose.msra.mxu0 0.0
      %1137 = vmatprep.subr.mxu0 0.0
      %1138 = vmatpush1.xpose.msra.mxu0 0.0
      %1139 = vmatprep.subr.mxu0 0.0
      %1140 = vmatpush1.xpose.msra.mxu0 0.0
      %1141 = vmatprep.subr.mxu0 0.0
      %1142 = vmatpush1.xpose.msra.mxu0 0.0
      %1143 = vmatprep.subr.mxu0 0.0
      %1144 = vmatpush1.xpose.msra.mxu0 0.0
      %1145 = vmatprep.subr.mxu0 0.0
      %1146 = vmatpush1.xpose.msra.mxu0 0.0
      %1147 = vmatprep.subr.mxu0 0.0
      %1148 = vmatpush1.xpose.msra.mxu0 0.0
      %1149 = vmatprep.subr.mxu0 0.0
      %1150 = vmatpush1.xpose.msra.mxu0 0.0
      %1151 = vmatprep.subr.mxu0 0.0
      %1152 = vmatpush1.xpose.msra.mxu0 0.0
      %1153 = vmatprep.subr.mxu0 0.0
      %1154 = vmatpush1.xpose.msra.mxu0 0.0
      %1155 = vmatprep.subr.mxu0 0.0
      %1156 = vmatpush1.xpose.msra.mxu0 0.0
      %1157 = vmatprep.subr.mxu0 0.0
      %1158 = vmatpush1.xpose.msra.mxu0 0.0
      %1159 = vmatprep.subr.mxu0 0.0
      %1160 = vmatpush1.xpose.msra.mxu0 0.0
      %1161 = vmatprep.subr.mxu0 0.0
      %1162 = vmatpush1.xpose.msra.mxu0 0.0
      %1163 = vmatprep.subr.mxu0 0.0
      %1164 = vmatpush1.xpose.msra.mxu0 0.0
      %1165 = vmatprep.subr.mxu0 0.0
      %1166 = vmatpush1.xpose.msra.mxu0 0.0
      %1167 = vmatprep.subr.mxu0 0.0
      %1168 = vmatpush1.xpose.msra.mxu0 0.0
      %1169 = vmatprep.subr.mxu0 0.0
      %1170 = vmatpush1.xpose.msra.mxu0 0.0
      %1171 = vmatprep.subr.mxu0 0.0
      %1172 = vmatpush1.xpose.msra.mxu0 0.0
      %1173 = vmatprep.subr.mxu0 0.0
      %1174 = vmatpush1.xpose.msra.mxu0 0.0
      %1175 = vmatprep.subr.mxu0 0.0
      %1176 = vmatpush1.xpose.msra.mxu0 0.0
      %1177 = vmatprep.mubr.f32.mxu0 0.0
      %1178 = vmatmul.mubr.f32.gmra.mrb[0].mxu0 %v1105
      %v1179 = vpop.f32.mrb[0].mxu0
      %v1180 = vadd.f32 0.0, %v1179
      %v1181 = vpop.f32.mrb[0].mxu0
      %1182 = vdwg.mxu0
      %v1184 = vsel %vm936, %v475, 0
      %v1187 = vsel %vm936, %v1021, 0
      %v1190 = vsel %vm936, %v1022, 0
      %1192 = vmatprep.subr.mxu0 0.0
      %1193 = vmatpush1.xpose.msra.mxu0 %v1187
      %1194 = vmatprep.subr.mxu0 0.0
      %1195 = vmatpush1.xpose.msra.mxu0 %v1190
      %1196 = vmatprep.subr.mxu0 0.0
      %1197 = vmatpush1.xpose.msra.mxu0 0.0
      %1198 = vmatprep.subr.mxu0 0.0
      %1199 = vmatpush1.xpose.msra.mxu0 0.0
      %1200 = vmatprep.subr.mxu0 0.0
      %1201 = vmatpush1.xpose.msra.mxu0 0.0
      %1202 = vmatprep.subr.mxu0 0.0
      %1203 = vmatpush1.xpose.msra.mxu0 0.0
      %1204 = vmatprep.subr.mxu0 0.0
      %1205 = vmatpush1.xpose.msra.mxu0 0.0
      %1206 = vmatprep.subr.mxu0 0.0
      %1207 = vmatpush1.xpose.msra.mxu0 0.0
      %1208 = vmatprep.subr.mxu0 0.0
      %1209 = vmatpush1.xpose.msra.mxu0 0.0
      %1210 = vmatprep.subr.mxu0 0.0
      %1211 = vmatpush1.xpose.msra.mxu0 0.0
      %1212 = vmatprep.subr.mxu0 0.0
      %1213 = vmatpush1.xpose.msra.mxu0 0.0
      %1214 = vmatprep.subr.mxu0 0.0
      %1215 = vmatpush1.xpose.msra.mxu0 0.0
      %1216 = vmatprep.subr.mxu0 0.0
      %1217 = vmatpush1.xpose.msra.mxu0 0.0
      %1218 = vmatprep.subr.mxu0 0.0
      %1219 = vmatpush1.xpose.msra.mxu0 0.0
      %1220 = vmatprep.subr.mxu0 0.0
      %1221 = vmatpush1.xpose.msra.mxu0 0.0
      %1222 = vmatprep.subr.mxu0 0.0
      %1223 = vmatpush1.xpose.msra.mxu0 0.0
      %1224 = vmatprep.subr.mxu0 0.0
      %1225 = vmatpush1.xpose.msra.mxu0 0.0
      %1226 = vmatprep.subr.mxu0 0.0
      %1227 = vmatpush1.xpose.msra.mxu0 0.0
      %1228 = vmatprep.subr.mxu0 0.0
      %1229 = vmatpush1.xpose.msra.mxu0 0.0
      %1230 = vmatprep.subr.mxu0 0.0
      %1231 = vmatpush1.xpose.msra.mxu0 0.0
      %1232 = vmatprep.subr.mxu0 0.0
      %1233 = vmatpush1.xpose.msra.mxu0 0.0
      %1234 = vmatprep.subr.mxu0 0.0
      %1235 = vmatpush1.xpose.msra.mxu0 0.0
      %1236 = vmatprep.subr.mxu0 0.0
      %1237 = vmatpush1.xpose.msra.mxu0 0.0
      %1238 = vmatprep.subr.mxu0 0.0
      %1239 = vmatpush1.xpose.msra.mxu0 0.0
      %1240 = vmatprep.subr.mxu0 0.0
      %1241 = vmatpush1.xpose.msra.mxu0 0.0
      %1242 = vmatprep.subr.mxu0 0.0
      %1243 = vmatpush1.xpose.msra.mxu0 0.0
      %1244 = vmatprep.subr.mxu0 0.0
      %1245 = vmatpush1.xpose.msra.mxu0 0.0
      %1246 = vmatprep.subr.mxu0 0.0
      %1247 = vmatpush1.xpose.msra.mxu0 0.0
      %1248 = vmatprep.subr.mxu0 0.0
      %1249 = vmatpush1.xpose.msra.mxu0 0.0
      %1250 = vmatprep.subr.mxu0 0.0
      %1251 = vmatpush1.xpose.msra.mxu0 0.0
      %1252 = vmatprep.subr.mxu0 0.0
      %1253 = vmatpush1.xpose.msra.mxu0 0.0
      %1254 = vmatprep.subr.mxu0 0.0
      %1255 = vmatpush1.xpose.msra.mxu0 0.0
      %1256 = vmatprep.mubr.f32.mxu0 0.0
      %1257 = vmatmul.mubr.f32.gmra.mrb[0].mxu0 %v1184
      %v1258 = vpop.f32.mrb[0].mxu0
      %v1259 = vadd.f32 0.0, %v1258
      %v1260 = vpop.f32.mrb[0].mxu0
      %1261 = vdwg.mxu0
      %v1263 = vsel %vm936, %v480, 0
      %v1266 = vsel %vm936, %v1023, 0
      %v1269 = vsel %vm936, %v1024, 0
      %1271 = vmatprep.subr.mxu0 0.0
      %1272 = vmatpush1.xpose.msra.mxu0 %v1266
      %1273 = vmatprep.subr.mxu0 0.0
      %1274 = vmatpush1.xpose.msra.mxu0 %v1269
      %1275 = vmatprep.subr.mxu0 0.0
      %1276 = vmatpush1.xpose.msra.mxu0 0.0
      %1277 = vmatprep.subr.mxu0 0.0
      %1278 = vmatpush1.xpose.msra.mxu0 0.0
      %1279 = vmatprep.subr.mxu0 0.0
      %1280 = vmatpush1.xpose.msra.mxu0 0.0
      %1281 = vmatprep.subr.mxu0 0.0
      %1282 = vmatpush1.xpose.msra.mxu0 0.0
      %1283 = vmatprep.subr.mxu0 0.0
      %1284 = vmatpush1.xpose.msra.mxu0 0.0
      %1285 = vmatprep.subr.mxu0 0.0
      %1286 = vmatpush1.xpose.msra.mxu0 0.0
      %1287 = vmatprep.subr.mxu0 0.0
      %1288 = vmatpush1.xpose.msra.mxu0 0.0
      %1289 = vmatprep.subr.mxu0 0.0
      %1290 = vmatpush1.xpose.msra.mxu0 0.0
      %1291 = vmatprep.subr.mxu0 0.0
      %1292 = vmatpush1.xpose.msra.mxu0 0.0
      %1293 = vmatprep.subr.mxu0 0.0
      %1294 = vmatpush1.xpose.msra.mxu0 0.0
      %1295 = vmatprep.subr.mxu0 0.0
      %1296 = vmatpush1.xpose.msra.mxu0 0.0
      %1297 = vmatprep.subr.mxu0 0.0
      %1298 = vmatpush1.xpose.msra.mxu0 0.0
      %1299 = vmatprep.subr.mxu0 0.0
      %1300 = vmatpush1.xpose.msra.mxu0 0.0
      %1301 = vmatprep.subr.mxu0 0.0
      %1302 = vmatpush1.xpose.msra.mxu0 0.0
      %1303 = vmatprep.subr.mxu0 0.0
      %1304 = vmatpush1.xpose.msra.mxu0 0.0
      %1305 = vmatprep.subr.mxu0 0.0
      %1306 = vmatpush1.xpose.msra.mxu0 0.0
      %1307 = vmatprep.subr.mxu0 0.0
      %1308 = vmatpush1.xpose.msra.mxu0 0.0
      %1309 = vmatprep.subr.mxu0 0.0
      %1310 = vmatpush1.xpose.msra.mxu0 0.0
      %1311 = vmatprep.subr.mxu0 0.0
      %1312 = vmatpush1.xpose.msra.mxu0 0.0
      %1313 = vmatprep.subr.mxu0 0.0
      %1314 = vmatpush1.xpose.msra.mxu0 0.0
      %1315 = vmatprep.subr.mxu0 0.0
      %1316 = vmatpush1.xpose.msra.mxu0 0.0
      %1317 = vmatprep.subr.mxu0 0.0
      %1318 = vmatpush1.xpose.msra.mxu0 0.0
      %1319 = vmatprep.subr.mxu0 0.0
      %1320 = vmatpush1.xpose.msra.mxu0 0.0
      %1321 = vmatprep.subr.mxu0 0.0
      %1322 = vmatpush1.xpose.msra.mxu0 0.0
      %1323 = vmatprep.subr.mxu0 0.0
      %1324 = vmatpush1.xpose.msra.mxu0 0.0
      %1325 = vmatprep.subr.mxu0 0.0
      %1326 = vmatpush1.xpose.msra.mxu0 0.0
      %1327 = vmatprep.subr.mxu0 0.0
      %1328 = vmatpush1.xpose.msra.mxu0 0.0
      %1329 = vmatprep.subr.mxu0 0.0
      %1330 = vmatpush1.xpose.msra.mxu0 0.0
      %1331 = vmatprep.subr.mxu0 0.0
      %1332 = vmatpush1.xpose.msra.mxu0 0.0
      %1333 = vmatprep.subr.mxu0 0.0
      %1334 = vmatpush1.xpose.msra.mxu0 0.0
      %1335 = vmatprep.mubr.f32.mxu0 0.0
      %1336 = vmatmul.mubr.f32.gmra.mrb[0].mxu0 %v1263
      %v1337 = vpop.f32.mrb[0].mxu0
      %v1338 = vadd.f32 0.0, %v1337
      %v1339 = vpop.f32.mrb[0].mxu0
      %1340 = vdwg.mxu0
      %1342 = vset.pattern.permute.xlu0 0
      %1343 = vperm.xlu0 %1342, %v253
      %v1344 = vpop.permute.xlu0 %1343
      %1347 = vset.pattern.permute.xlu0 0
      %1348 = vperm.xlu0 %1347, %v254
      %v1349 = vpop.permute.xlu0 %1348
      %1352 = vset.pattern.permute.xlu0 0
      %1353 = vperm.xlu0 %1352, %v255
      %v1354 = vpop.permute.xlu0 %1353
      %1357 = vset.pattern.permute.xlu0 0
      %1358 = vperm.xlu0 %1357, %v256
      %v1359 = vpop.permute.xlu0 %1358
      %v1362 = vsel %vm321, %v249, 0
      %v1365 = vsel %vm321, %v250, 0
      %v1368 = vsel %vm321, %v251, 0
      %v1371 = vsel %vm321, %v252, 0
      %1373 = vmatprep.subr.mxu0 0.0
      %1374 = vmatpush1.msra.mxu0 %v1101
      %1375 = vmatprep.subr.mxu0 0.0
      %1376 = vmatpush1.msra.mxu0 %v1180
      %1377 = vmatprep.subr.mxu0 0.0
      %1378 = vmatpush1.msra.mxu0 %v1259
      %1379 = vmatprep.subr.mxu0 0.0
      %1380 = vmatpush1.msra.mxu0 %v1338
      %1381 = vmatprep.subr.mxu0 0.0
      %1382 = vmatpush1.msra.mxu0 0.0
      %1383 = vmatprep.subr.mxu0 0.0
      %1384 = vmatpush1.msra.mxu0 0.0
      %1385 = vmatprep.subr.mxu0 0.0
      %1386 = vmatpush1.msra.mxu0 0.0
      %1387 = vmatprep.subr.mxu0 0.0
      %1388 = vmatpush1.msra.mxu0 0.0
      %1389 = vmatprep.subr.mxu0 0.0
      %1390 = vmatpush1.msra.mxu0 0.0
      %1391 = vmatprep.subr.mxu0 0.0
      %1392 = vmatpush1.msra.mxu0 0.0
      %1393 = vmatprep.subr.mxu0 0.0
      %1394 = vmatpush1.msra.mxu0 0.0
      %1395 = vmatprep.subr.mxu0 0.0
      %1396 = vmatpush1.msra.mxu0 0.0
      %1397 = vmatprep.subr.mxu0 0.0
      %1398 = vmatpush1.msra.mxu0 0.0
      %1399 = vmatprep.subr.mxu0 0.0
      %1400 = vmatpush1.msra.mxu0 0.0
      %1401 = vmatprep.subr.mxu0 0.0
      %1402 = vmatpush1.msra.mxu0 0.0
      %1403 = vmatprep.subr.mxu0 0.0
      %1404 = vmatpush1.msra.mxu0 0.0
      %1405 = vmatprep.subr.mxu0 0.0
      %1406 = vmatpush1.msra.mxu0 0.0
      %1407 = vmatprep.subr.mxu0 0.0
      %1408 = vmatpush1.msra.mxu0 0.0
      %1409 = vmatprep.subr.mxu0 0.0
      %1410 = vmatpush1.msra.mxu0 0.0
      %1411 = vmatprep.subr.mxu0 0.0
      %1412 = vmatpush1.msra.mxu0 0.0
      %1413 = vmatprep.subr.mxu0 0.0
      %1414 = vmatpush1.msra.mxu0 0.0
      %1415 = vmatprep.subr.mxu0 0.0
      %1416 = vmatpush1.msra.mxu0 0.0
      %1417 = vmatprep.subr.mxu0 0.0
      %1418 = vmatpush1.msra.mxu0 0.0
      %1419 = vmatprep.subr.mxu0 0.0
      %1420 = vmatpush1.msra.mxu0 0.0
      %1421 = vmatprep.subr.mxu0 0.0
      %1422 = vmatpush1.msra.mxu0 0.0
      %1423 = vmatprep.subr.mxu0 0.0
      %1424 = vmatpush1.msra.mxu0 0.0
      %1425 = vmatprep.subr.mxu0 0.0
      %1426 = vmatpush1.msra.mxu0 0.0
      %1427 = vmatprep.subr.mxu0 0.0
      %1428 = vmatpush1.msra.mxu0 0.0
      %1429 = vmatprep.subr.mxu0 0.0
      %1430 = vmatpush1.msra.mxu0 0.0
      %1431 = vmatprep.subr.mxu0 0.0
      %1432 = vmatpush1.msra.mxu0 0.0
      %1433 = vmatprep.subr.mxu0 0.0
      %1434 = vmatpush1.msra.mxu0 0.0
      %1435 = vmatprep.subr.mxu0 0.0
      %1436 = vmatpush1.msra.mxu0 0.0
      %1437 = vmatprep.mubr.f32.mxu0 0.0
      %1438 = vmatmul.mubr.f32.gmra.mrb[0].mxu0 %v1362
      %v1439 = vpop.f32.mrb[0].mxu0
      %v1440 = vadd.f32 %v1344, %v1439
      %v1441 = vpop.f32.mrb[0].mxu0
      %1442 = vmatprep.mubr.f32.mxu0 0.0
      %1443 = vmatmul.mubr.f32.gmra.mrb[0].mxu0 %v1365
      %v1444 = vpop.f32.mrb[0].mxu0
      %v1445 = vadd.f32 %v1349, %v1444
      %v1446 = vpop.f32.mrb[0].mxu0
      %1447 = vmatprep.mubr.f32.mxu0 0.0
      %1448 = vmatmul.mubr.f32.gmra.mrb[0].mxu0 %v1368
      %v1449 = vpop.f32.mrb[0].mxu0
      %v1450 = vadd.f32 %v1354, %v1449
      %v1451 = vpop.f32.mrb[0].mxu0
      %1452 = vmatprep.mubr.f32.mxu0 0.0
      %1453 = vmatmul.mubr.f32.gmra.mrb[0].mxu0 %v1371
      %v1454 = vpop.f32.mrb[0].mxu0
      %v1455 = vadd.f32 %v1359, %v1454
      %v1456 = vpop.f32.mrb[0].mxu0
      %1457 = vdwg.mxu0
      %1458 = vst.msk [vmem:[%s224] sm:$0xff] %vm936, %v1440
      %1459 = vst.msk [vmem:[%s224 + $0x8] sm:$0xff] %vm936, %v1445
      %1460 = vst.msk [vmem:[%s224 + $0x10] sm:$0xff] %vm936, %v1450
      %1461 = vst.msk [vmem:[%s224 + $0x18] sm:$0xff] %vm936, %v1455
      %p1462 = scmp.lt.s32.totalorder %s16, 7
      %s1463 = scalar_select %p1462, %s16, 7
      %s1464 = smul.addr %s1463, 4
      %s1465 = smul.addr %s1464, 8
      %s1466 = scalar_lea.vmem %s5, %s1465
      // Predicated region
      $region41: #{attention_forward.1} parent=39 // pred_check
        %p1467 = pneg %p144
      $region42: #{attention_forward.1} parent=39 // pred_check_branch
        %1469 = sbr.rel (%p1467) target = $region44
      $region43: #{attention_forward.1} parent=39 // pred_region
        _
      $region44: #{attention_forward.1} parent=39 // pred_fallthru
        _
    $region40: #{attention_forward.1} parent=5 // pred_fallthru
      _
    %p1470 = scmp.le.s32.totalorder 2, %s11
    // Predicated region
    $region45: #{attention_forward.1} parent=5 // pred_check
      %p1471 = pneg %p1470
    $region46: #{attention_forward.1} parent=5 // pred_check_branch
      %1473 = sbr.rel (%p1471) target = $region48
    $region47: #{attention_forward.1} parent=5 // pred_region
      %s1474 = ssub.s32 %s11, 2
      // Predicated region
      $region49: #{attention_forward.1} parent=47 // pred_check
        %p1475 = pneg %p150
      $region50: #{attention_forward.1} parent=47 // pred_check_branch
        %1477 = sbr.rel (%p1475) target = $region52
      $region51: #{attention_forward.1} parent=47 // pred_region
        %p1478 = scmp.lt.s32.totalorder %s17, 7
        %s1479 = scalar_select %p1478, %s17, 7
        %s1480 = smul.addr %s1479, 4
        %s1481 = smul.addr %s1480, 8
        %s1482 = scalar_lea.vmem %s5, %s1481
      $region52: #{attention_forward.1} parent=47 // pred_fallthru
        _
    $region48: #{attention_forward.1} parent=5 // pred_fallthru
      _
  $region6: #{attention_forward.1} parent=0 // loop_footer
    %s15 = sadd.s32 1, %s11
  $region7: #{attention_forward.1} parent=0 // loop_footer_branch
    %10 = sbr.rel target = $region3
  $region8: #{attention_forward.1} parent=0 // loop_exit
    _

</llo_original>
